<compile_context>
chip_gen: v7x
topology: tpu7x:2x2x1
jax: 0.10.0
libtpu: 0.0.40
codegen_flags: <defaults>
</compile_context>

<pallas_src>
import math

import jax
import jax.numpy as jnp
from jax import lax
from jax.experimental import pallas as pl
from jax.experimental.pallas import tpu as pltpu


def _round_up(x, n):
    return ((x + n - 1) // n) * n


def _make_ffn_kernel(use_scratch, approximate_gelu):
    inv_sqrt2 = 1.0 / math.sqrt(2.0)
    tanh_c = math.sqrt(2.0 / math.pi)

    def kernel(x_ref, w1_ref, b1_ref, w2_ref, b2_ref, o_ref, *scratch):
        # x_ref:  (TM, D)      w1_ref: (D, TH)      b1_ref: (n_h, TH) resident
        # w2_ref: (TH, D)      b2_ref: (1, D)       o_ref:  (TM, D)
        # scratch: (TM, D) f32 accumulator, only when o_ref is not f32.
        acc_ref = scratch[0] if use_scratch else o_ref
        h_idx = pl.program_id(1)

        @pl.when(h_idx == 0)
        def _():
            acc_ref[...] = jnp.zeros_like(acc_ref)

        # First linear for this hidden block: x @ W1[:, h_blk] + b1[h_blk].
        # Operands stay in compute dtype (bf16 by default); accumulate in f32.
        h = jnp.dot(x_ref[...], w1_ref[...],
                    preferred_element_type=jnp.float32)
        h = h + b1_ref[pl.ds(h_idx, 1), :].astype(jnp.float32)

        if approximate_gelu:
            # tanh-GELU: transcendental goes to the EUP slot (cheap on VALU).
            h = 0.5 * h * (1.0 + jnp.tanh(tanh_c * (h + 0.044715 * h * h * h)))
        else:
            # Exact erf-GELU (matches torch.nn.GELU default).
            h = 0.5 * h * (1.0 + lax.erf(h * inv_sqrt2))

        # Dropout(p=0.1): identity in eval mode.

        # Second linear partial product: accumulate gelu(h_blk) @ W2[h_blk, :].
        acc_ref[...] += jnp.dot(h.astype(w2_ref.dtype), w2_ref[...],
                                preferred_element_type=jnp.float32)

        @pl.when(h_idx == pl.num_programs(1) - 1)
        def _():
            out = acc_ref[...] + b2_ref[...].astype(jnp.float32)
            o_ref[...] = out.astype(o_ref.dtype)

    return kernel


def _fit_tiles(m_blk, h_blk, d_pad, in_bytes, w_bytes, out_bytes,
               use_scratch, budget):
    """Shrink (m_blk, h_blk) until the double-buffered footprint fits."""
    def footprint(mb, hb):
        f = 2 * mb * d_pad * in_bytes        # x tile (double-buffered)
        f += 2 * d_pad * hb * w_bytes        # W1 block
        f += 2 * hb * d_pad * w_bytes        # W2 block
        f += 2 * mb * d_pad * out_bytes      # output tile
        if use_scratch:
            f += mb * d_pad * 4              # f32 accumulator scratch
        return f

    while footprint(m_blk, h_blk) > budget:
        if h_blk >= m_blk and h_blk > 128:
            h_blk = max(128, _round_up(h_blk // 2, 128))
        elif m_blk > 8:
            m_blk = max(8, _round_up(m_blk // 2, 8))
        else:
            break
    return m_blk, h_blk


def feed_forward(x, w1, b1, w2, b2, *, tile_m=512, tile_h=1024,
                 compute_dtype=jnp.bfloat16, approximate_gelu=False):
    """x: (..., d_model). w1: (d_model, hidden), w2: (hidden, d_model)."""
    orig_shape = x.shape
    d_model = orig_shape[-1]
    hidden = w1.shape[1]
    out_dtype = x.dtype

    x2d = x.reshape(-1, d_model)
    m = x2d.shape[0]

    in_bytes = jnp.dtype(compute_dtype).itemsize
    w_bytes = in_bytes
    out_bytes = jnp.dtype(out_dtype).itemsize
    use_scratch = out_dtype != jnp.float32   # f32 outputs accumulate in o_ref

    # ---- VMEM budget (generation-aware, with headroom) -----------------
    try:
        vmem_cap = int(pltpu.get_tpu_info().vmem_capacity_bytes)
    except Exception:
        vmem_cap = 64 * 1024 * 1024          # conservative (v7x-sized)
    vmem_limit = min(int(vmem_cap * 0.80), 112 * 1024 * 1024)
    tile_budget = int(vmem_limit * 0.70)     # slack for Mosaic scratch etc.

    # ---- padding / tile selection --------------------------------------
    # Lane-pad to 256 (v6e/v7x 256x256 MXU) unless d_model is tiny.
    lane_align = 128 if d_model <= 128 else 256
    d_pad = _round_up(max(d_model, 128), lane_align)
    h_blk = min(_round_up(tile_h, lane_align),
                _round_up(max(hidden, 128), lane_align))
    m_blk = min(_round_up(tile_m, 8), _round_up(max(m, 8), 8))
    m_blk, h_blk = _fit_tiles(m_blk, h_blk, d_pad, in_bytes, w_bytes,
                              out_bytes, use_scratch, tile_budget)

    h_pad = _round_up(hidden, h_blk)
    m_pad = _round_up(m, m_blk)
    grid = (m_pad // m_blk, h_pad // h_blk)
    n_h = grid[1]

    # ---- cast + pad operands --------------------------------------------
    x2d = x2d.astype(compute_dtype)
    if (m_pad, d_pad) != (m, d_model):
        x2d = jnp.pad(x2d, ((0, m_pad - m), (0, d_pad - d_model)))
    w1p = jnp.pad(w1.astype(compute_dtype),
                  ((0, d_pad - d_model), (0, h_pad - hidden)))
    w2p = jnp.pad(w2.astype(compute_dtype),
                  ((0, h_pad - hidden), (0, d_pad - d_model)))
    # Biases stay f32 (added in the f32 accumulator).  b1 is reshaped so it
    # can stay fully VMEM-resident and be sliced per H block in-kernel.
    b1p = jnp.pad(b1.astype(jnp.float32).reshape(1, hidden),
                  ((0, 0), (0, h_pad - hidden))).reshape(n_h, h_blk)
    b2p = jnp.pad(b2.astype(jnp.float32).reshape(1, d_model),
                  ((0, 0), (0, d_pad - d_model)))

    # ---- cost estimate (counts weight re-streaming per M tile) ----------
    bytes_accessed = (x2d.size * in_bytes
                      + grid[0] * (w1p.size + w2p.size) * w_bytes
                      + (b1p.size + b2p.size) * 4
                      + m_pad * d_pad * out_bytes)
    cost = pl.CostEstimate(
        flops=4 * m_pad * d_pad * h_pad,      # two matmuls, 2 flops/MAC
        transcendentals=m_pad * h_pad,        # erf/tanh per hidden element
        bytes_accessed=int(bytes_accessed),
    )

    kernel = _make_ffn_kernel(use_scratch, approximate_gelu)
    scratch_shapes = ([pltpu.VMEM((m_blk, d_pad), jnp.float32)]
                      if use_scratch else [])

    out = pl.pallas_call(
        kernel,
        out_shape=jax.ShapeDtypeStruct((m_pad, d_pad), out_dtype),
        grid_spec=pltpu.PrefetchScalarGridSpec(
            num_scalar_prefetch=0,
            grid=grid,
            in_specs=[
                pl.BlockSpec((m_blk, d_pad), lambda i, h: (i, 0)),   # x tile
                pl.BlockSpec((d_pad, h_blk), lambda i, h: (0, h)),   # W1 block
                pl.BlockSpec((n_h, h_blk), lambda i, h: (0, 0)),     # b1 (resident)
                pl.BlockSpec((h_blk, d_pad), lambda i, h: (h, 0)),   # W2 block
                pl.BlockSpec((1, d_pad), lambda i, h: (0, 0)),       # b2 (resident)
            ],
            out_specs=pl.BlockSpec((m_blk, d_pad), lambda i, h: (i, 0)),
            scratch_shapes=scratch_shapes,
        ),
        compiler_params=pltpu.CompilerParams(
            dimension_semantics=("parallel", "arbitrary"),
            vmem_limit_bytes=vmem_limit,
        ),
        cost_estimate=cost,
    )(x2d, w1p, b1p, w2p, b2p)

    return out[:m, :d_model].reshape(orig_shape)


def init_params(key, d_model):
    """Deterministic init mirroring nn.Linear shapes (stored as (in, out))."""
    hidden = 4 * d_model
    k1, k2, k3, k4 = jax.random.split(key, 4)
    lim1 = 1.0 / math.sqrt(d_model)
    lim2 = 1.0 / math.sqrt(hidden)
    w1 = jax.random.uniform(k1, (d_model, hidden), jnp.float32, -lim1, lim1)
    b1 = jax.random.uniform(k2, (hidden,), jnp.float32, -lim1, lim1)
    w2 = jax.random.uniform(k3, (hidden, d_model), jnp.float32, -lim2, lim2)
    b2 = jax.random.uniform(k4, (d_model,), jnp.float32, -lim2, lim2)
    return w1, b1, w2, b2


if __name__ == "__main__":
    # Module default d_model=256 (hidden=1024), small batch/seq.
    batch, seq, d_model = 2, 8, 256
    key = jax.random.PRNGKey(0)
    kx, kp = jax.random.split(key)
    x = jax.random.normal(kx, (batch, seq, d_model), jnp.float32)
    w1, b1, w2, b2 = init_params(kp, d_model)

    # Reference in plain JAX (exact erf GELU, eval-mode dropout = identity).
    h_ref = x @ w1 + b1
    h_ref = 0.5 * h_ref * (1.0 + lax.erf(h_ref / jnp.sqrt(2.0)))
    ref = h_ref @ w2 + b2

    # f32 compute path (exact semantics).
    out_f32 = feed_forward(x, w1, b1, w2, b2, compute_dtype=jnp.float32)
    out_f32 = jax.block_until_ready(out_f32)
    assert out_f32.shape == x.shape
    assert jnp.allclose(out_f32, ref, atol=5e-3, rtol=5e-3), (
        float(jnp.max(jnp.abs(out_f32 - ref))))

    # Default bf16 compute path (f32 accumulation, f32 output).
    out_bf16 = feed_forward(x, w1, b1, w2, b2)
    out_bf16 = jax.block_until_ready(out_bf16)
    assert out_bf16.shape == x.shape
    assert jnp.allclose(out_bf16, ref, atol=5e-2, rtol=5e-2), (
        float(jnp.max(jnp.abs(out_bf16 - ref))))

    print("KERNEL_OK")
</pallas_src>

<mosaic_0001>
module attributes {stable_mosaic.version = 11 : i64} {
  func.func @kernel(%arg0: i32, %arg1: i32, %arg2: memref<16x256xf32, #tpu.memory_space<vmem>>, %arg3: memref<256x1024xf32, #tpu.memory_space<vmem>>, %arg4: memref<1x1024xf32, #tpu.memory_space<vmem>>, %arg5: memref<1024x256xf32, #tpu.memory_space<vmem>>, %arg6: memref<1x256xf32, #tpu.memory_space<vmem>>, %arg7: memref<16x256xf32, #tpu.memory_space<vmem>>) attributes {dimension_semantics = [#tpu.dimension_semantics<parallel>, #tpu.dimension_semantics<arbitrary>], iteration_bounds = array<i64: 1, 1>, scalar_prefetch = 0 : i64, scratch_operands = 0 : i64, tpu.core_type = #tpu.core_type<tc>, window_params = [{transform_indices = @transform_0, window_bounds = array<i64: 16, 256>}, {transform_indices = @transform_1, window_bounds = array<i64: 256, 1024>}, {pipeline_mode = #tpu.pipeline_mode<synchronous>, transform_indices = @transform_2, window_bounds = array<i64: 1, 1024>}, {transform_indices = @transform_3, window_bounds = array<i64: 1024, 256>}, {pipeline_mode = #tpu.pipeline_mode<synchronous>, transform_indices = @transform_4, window_bounds = array<i64: 1, 256>}, {transform_indices = @transform_5, window_bounds = array<i64: 16, 256>}]} {
    %c0_i32 = arith.constant 0 : i32
    %0 = arith.cmpi eq, %arg1, %c0_i32 : i32
    %1 = arith.extui %0 : i1 to i32
    %c0_i32_0 = arith.constant 0 : i32
    %2 = arith.cmpi ne, %1, %c0_i32_0 : i32
    scf.if %2 {
      %cst_17 = arith.constant 0.000000e+00 : f32
      %26 = vector.broadcast %cst_17 : f32 to vector<16x256xf32>
      %c0_18 = arith.constant 0 : index
      %c0_19 = arith.constant 0 : index
      %27 = vector.load %arg7[%c0_18, %c0_19] : memref<16x256xf32, #tpu.memory_space<vmem>>, vector<16x256xf32>
      tpu.vector_store %arg7[%c0_18, %c0_19], %26 {strides = array<i32>} : memref<16x256xf32, #tpu.memory_space<vmem>>, vector<16x256xf32>,
    } else {
    }
    %c0 = arith.constant 0 : index
    %c0_1 = arith.constant 0 : index
    %3 = vector.load %arg2[%c0, %c0_1] : memref<16x256xf32, #tpu.memory_space<vmem>>, vector<16x256xf32>
    %c0_2 = arith.constant 0 : index
    %c0_3 = arith.constant 0 : index
    %4 = vector.load %arg3[%c0_2, %c0_3] : memref<256x1024xf32, #tpu.memory_space<vmem>>, vector<256x1024xf32>
    %cst = arith.constant dense<0.000000e+00> : vector<16x1024xf32>
    %5 = tpu.matmul %3, %4, %cst {dimension_numbers = #tpu.dot_dimension_numbers<[1], [0], [0], [1], [0, 0, 1, 1], [], []>} : vector<16x256xf32>, vector<256x1024xf32>, vector<16x1024xf32> -> vector<16x1024xf32>
    %6 = arith.index_cast %arg1 : i32 to index
    %c0_4 = arith.constant 0 : index
    %7 = vector.load %arg4[%6, %c0_4] : memref<1x1024xf32, #tpu.memory_space<vmem>>, vector<1x1024xf32>
    %8 = vector.broadcast %7 : vector<1x1024xf32> to vector<16x1024xf32>
    %9 = arith.addf %5, %8 : vector<16x1024xf32>
    %cst_5 = arith.constant 5.000000e-01 : f32
    %10 = vector.broadcast %cst_5 : f32 to vector<16x1024xf32>
    %11 = arith.mulf %10, %9 : vector<16x1024xf32>
    %cst_6 = arith.constant 0.707106769 : f32
    %12 = vector.broadcast %cst_6 : f32 to vector<16x1024xf32>
    %13 = arith.mulf %9, %12 : vector<16x1024xf32>
    %14 = math.erf %13 : vector<16x1024xf32>
    %cst_7 = arith.constant 1.000000e+00 : f32
    %15 = vector.broadcast %cst_7 : f32 to vector<16x1024xf32>
    %16 = arith.addf %15, %14 : vector<16x1024xf32>
    %17 = arith.mulf %11, %16 : vector<16x1024xf32>
    %c0_8 = arith.constant 0 : index
    %c0_9 = arith.constant 0 : index
    %18 = vector.load %arg7[%c0_8, %c0_9] : memref<16x256xf32, #tpu.memory_space<vmem>>, vector<16x256xf32>
    %c0_10 = arith.constant 0 : index
    %c0_11 = arith.constant 0 : index
    %19 = vector.load %arg5[%c0_10, %c0_11] : memref<1024x256xf32, #tpu.memory_space<vmem>>, vector<1024x256xf32>
    %cst_12 = arith.constant dense<0.000000e+00> : vector<16x256xf32>
    %20 = tpu.matmul %17, %19, %cst_12 {dimension_numbers = #tpu.dot_dimension_numbers<[1], [0], [0], [1], [0, 0, 1, 1], [], []>} : vector<16x1024xf32>, vector<1024x256xf32>, vector<16x256xf32> -> vector<16x256xf32>
    %21 = arith.addf %18, %20 : vector<16x256xf32>
    %c0_13 = arith.constant 0 : index
    %c0_14 = arith.constant 0 : index
    %22 = vector.load %arg7[%c0_13, %c0_14] : memref<16x256xf32, #tpu.memory_space<vmem>>, vector<16x256xf32>
    tpu.vector_store %arg7[%c0_13, %c0_14], %21 {strides = array<i32>} : memref<16x256xf32, #tpu.memory_space<vmem>>, vector<16x256xf32>,
    %c0_i32_15 = arith.constant 0 : i32
    %23 = arith.cmpi eq, %arg1, %c0_i32_15 : i32
    %24 = arith.extui %23 : i1 to i32
    %c0_i32_16 = arith.constant 0 : i32
    %25 = arith.cmpi ne, %24, %c0_i32_16 : i32
    scf.if %25 {
      %c0_17 = arith.constant 0 : index
      %c0_18 = arith.constant 0 : index
      %26 = vector.load %arg7[%c0_17, %c0_18] : memref<16x256xf32, #tpu.memory_space<vmem>>, vector<16x256xf32>
      %c0_19 = arith.constant 0 : index
      %c0_20 = arith.constant 0 : index
      %27 = vector.load %arg6[%c0_19, %c0_20] : memref<1x256xf32, #tpu.memory_space<vmem>>, vector<1x256xf32>
      %28 = vector.broadcast %27 : vector<1x256xf32> to vector<16x256xf32>
      %29 = arith.addf %26, %28 : vector<16x256xf32>
      %c0_21 = arith.constant 0 : index
      %c0_22 = arith.constant 0 : index
      %30 = vector.load %arg7[%c0_21, %c0_22] : memref<16x256xf32, #tpu.memory_space<vmem>>, vector<16x256xf32>
      tpu.vector_store %arg7[%c0_21, %c0_22], %29 {strides = array<i32>} : memref<16x256xf32, #tpu.memory_space<vmem>>, vector<16x256xf32>,
    } else {
    }
    return
  }
  func.func @transform_0(%arg0: i32, %arg1: i32) -> (i32, i32) {
    %c0_i32 = arith.constant 0 : i32
    %c0_i32_0 = arith.constant 0 : i32
    return %arg0, %c0_i32 : i32, i32
  }
  func.func @transform_1(%arg0: i32, %arg1: i32) -> (i32, i32) {
    %c0_i32 = arith.constant 0 : i32
    %c0_i32_0 = arith.constant 0 : i32
    return %c0_i32, %arg1 : i32, i32
  }
  func.func @transform_2(%arg0: i32, %arg1: i32) -> (i32, i32) {
    %c0_i32 = arith.constant 0 : i32
    %c0_i32_0 = arith.constant 0 : i32
    %c0_i32_1 = arith.constant 0 : i32
    return %c0_i32, %c0_i32_0 : i32, i32
  }
  func.func @transform_3(%arg0: i32, %arg1: i32) -> (i32, i32) {
    %c0_i32 = arith.constant 0 : i32
    %c0_i32_0 = arith.constant 0 : i32
    return %arg1, %c0_i32 : i32, i32
  }
  func.func @transform_4(%arg0: i32, %arg1: i32) -> (i32, i32) {
    %c0_i32 = arith.constant 0 : i32
    %c0_i32_0 = arith.constant 0 : i32
    %c0_i32_1 = arith.constant 0 : i32
    return %c0_i32, %c0_i32_0 : i32, i32
  }
  func.func @transform_5(%arg0: i32, %arg1: i32) -> (i32, i32) {
    %c0_i32 = arith.constant 0 : i32
    %c0_i32_0 = arith.constant 0 : i32
    return %arg0, %c0_i32 : i32, i32
  }
}

</mosaic_0001>

<llo_original>
// kernel: tpu_custom_call.1
$region0: #{tpu_custom_call.1}
  #allocation0 [shape = 'u32[]', space=smem, size = 0x4, offset = 0x4, fixed_abs, tag = 'smem constant byte address 0x4 - core index']
  #allocation1 [shape = 'u32[144,128]{1,0:T(1,128)}', space=vmem, size = 0x12000, scoped, tag = 'internal scratch']
  %s0 = inlined_call_operand.hbm [shape: f32[16,256], index: 0, kind: input, shape index: {}]
  %s1 = inlined_call_operand.hbm [shape: f32[256,1024], index: 1, kind: input, shape index: {}]
  %s2 = inlined_call_operand.hbm [shape: f32[1,1024], index: 2, kind: input, shape index: {}]
  %s3 = inlined_call_operand.hbm [shape: f32[1024,256], index: 3, kind: input, shape index: {}]
  %s4 = inlined_call_operand.vmem [shape: f32[1,256], index: 4, kind: input, shape index: {}]
  %s5 = inlined_call_operand.hbm [shape: f32[16,256], index: 5, kind: output, shape index: {}]
  %s6 = sld [smem:[#allocation0]]
  $region54: #{tpu_custom_call.1} parent=0
    _
  %s8 = ssub.s32 1, %s6
  %s9 = scalar_select 0, %s8, %s6
  $region1: #{tpu_custom_call.1} parent=0
    #allocation2 [shape = 'u8[16384]{0}', space=vmem, size = 0x4000, scoped, tag = 'input window, operand 0, single buffered']
    #allocation3 [shape = 's32[1]{0}', space=sflag, size = 0x4, scoped, tag = 'scoped memory for tpu_custom_call.1']
    #allocation4 [shape = 's32[1]{0}', space=sflag, size = 0x4, scoped, tag = 'scoped memory for tpu_custom_call.1']
    #allocation5 [shape = 'u8[1048576]{0}', space=vmem, size = 0x100000, scoped, tag = 'input window, operand 1, single buffered']
    #allocation6 [shape = 's32[1]{0}', space=sflag, size = 0x4, scoped, tag = 'scoped memory for tpu_custom_call.1']
    #allocation7 [shape = 'u8[4096]{0}', space=vmem, size = 0x1000, scoped, tag = 'input window, operand 2, single buffered']
    #allocation8 [shape = 'u8[1048576]{0}', space=vmem, size = 0x100000, scoped, tag = 'input window, operand 3, single buffered']
    #allocation9 [shape = 's32[1]{0}', space=sflag, size = 0x4, scoped, tag = 'scoped memory for tpu_custom_call.1']
    #allocation10 [shape = 'u8[16384]{0}', space=vmem, size = 0x4000, scoped, tag = 'output window, operand 0, single buffered']
    %10 = vsyncpa [#allocation3], 0
    %11 = vsyncpa [#allocation6], 0
    %12 = vsyncpa [#allocation9], 0
    %13 = vsyncpa [#allocation4], 0
    // Predicated region
    $region2: #{tpu_custom_call.1} parent=1 // pred_check
      _
    $region3: #{tpu_custom_call.1} parent=1 // pred_check_branch
      %15 = sbr.rel (0) target = $region5
    $region4: #{tpu_custom_call.1} parent=1 // pred_region
      %s17 = ssub.s32 512, 512
      %18 = vsyncadd [#allocation3], %s17
      %s19 = sshll.u32 [#allocation2], 4
      %s20 = int_to_ptr.vmem [resolvable:$true] %s19
      %25 = dma.hbm_to_vmem [thread:$0]  %s0, 512, %s20, [#allocation3], 256, 256, 16
    $region5: #{tpu_custom_call.1} parent=1 // pred_fallthru
      _
    // Predicated region
    $region6: #{tpu_custom_call.1} parent=1 // pred_check
      _
    $region7: #{tpu_custom_call.1} parent=1 // pred_check_branch
      %27 = sbr.rel (0) target = $region9
    $region8: #{tpu_custom_call.1} parent=1 // pred_region
      %s29 = ssub.s32 32768, 32768
      %30 = vsyncadd [#allocation6], %s29
      %s31 = sshll.u32 [#allocation5], 4
      %s32 = int_to_ptr.vmem [resolvable:$true] %s31
      %37 = dma.hbm_to_vmem [thread:$0]  %s1, 32768, %s32, [#allocation6], 1024, 1024, 64
    $region9: #{tpu_custom_call.1} parent=1 // pred_fallthru
      _
    // Predicated region
    $region10: #{tpu_custom_call.1} parent=1 // pred_check
      _
    $region11: #{tpu_custom_call.1} parent=1 // pred_check_branch
      %39 = sbr.rel (0) target = $region13
    $region12: #{tpu_custom_call.1} parent=1 // pred_region
      %s41 = ssub.s32 128, 128
      %42 = vsyncadd [#allocation6], %s41
      %s44 = sshll.u32 [#allocation7], 4
      %s45 = int_to_ptr.vmem [resolvable:$true] %s44
      %47 = dma.hbm_to_vmem [thread:$0]  %s2, 128, %s45, [#allocation6]
    $region13: #{tpu_custom_call.1} parent=1 // pred_fallthru
      _
    // Predicated region
    $region14: #{tpu_custom_call.1} parent=1 // pred_check
      _
    $region15: #{tpu_custom_call.1} parent=1 // pred_check_branch
      %49 = sbr.rel (0) target = $region17
    $region16: #{tpu_custom_call.1} parent=1 // pred_region
      %s51 = ssub.s32 32768, 32768
      %52 = vsyncadd [#allocation9], %s51
      %s53 = sshll.u32 [#allocation8], 4
      %s54 = int_to_ptr.vmem [resolvable:$true] %s53
      %59 = dma.hbm_to_vmem [thread:$0]  %s3, 32768, %s54, [#allocation9], 256, 256, 16
    $region17: #{tpu_custom_call.1} parent=1 // pred_fallthru
      _
    // Predicated region
    $region18: #{tpu_custom_call.1} parent=1 // pred_check
      _
    $region19: #{tpu_custom_call.1} parent=1 // pred_check_branch
      %61 = sbr.rel (0) target = $region21
    $region20: #{tpu_custom_call.1} parent=1 // pred_region
      _
    $region21: #{tpu_custom_call.1} parent=1 // pred_fallthru
      _
    // Predicated region
    $region22: #{tpu_custom_call.1} parent=1 // pred_check
      _
    $region23: #{tpu_custom_call.1} parent=1 // pred_check_branch
      %63 = sbr.rel (0) target = $region25
    $region24: #{tpu_custom_call.1} parent=1 // pred_region
      %64 = dma.done [#allocation3], 512
    $region25: #{tpu_custom_call.1} parent=1 // pred_fallthru
      _
    // Predicated region
    $region26: #{tpu_custom_call.1} parent=1 // pred_check
      _
    $region27: #{tpu_custom_call.1} parent=1 // pred_check_branch
      %66 = sbr.rel (0) target = $region29
    $region28: #{tpu_custom_call.1} parent=1 // pred_region
      %67 = dma.done [#allocation6], 32768
    $region29: #{tpu_custom_call.1} parent=1 // pred_fallthru
      _
    // Predicated region
    $region30: #{tpu_custom_call.1} parent=1 // pred_check
      _
    $region31: #{tpu_custom_call.1} parent=1 // pred_check_branch
      %69 = sbr.rel (0) target = $region33
    $region32: #{tpu_custom_call.1} parent=1 // pred_region
      %70 = dma.done [#allocation6], 128
    $region33: #{tpu_custom_call.1} parent=1 // pred_fallthru
      _
    // Predicated region
    $region34: #{tpu_custom_call.1} parent=1 // pred_check
      _
    $region35: #{tpu_custom_call.1} parent=1 // pred_check_branch
      %72 = sbr.rel (0) target = $region37
    $region36: #{tpu_custom_call.1} parent=1 // pred_region
      %73 = dma.done [#allocation9], 32768
    $region37: #{tpu_custom_call.1} parent=1 // pred_fallthru
      _
    %p74 = scmp.eq.s32.totalorder 0, 0
    // Predicated region
    $region38: #{tpu_custom_call.1} parent=1 // pred_check
      %p75 = pneg %p74
    $region39: #{tpu_custom_call.1} parent=1 // pred_check_branch
      %77 = sbr.rel (%p75) target = $region41
    $region40: #{tpu_custom_call.1} parent=1 // pred_region
      %78 = vst [vmem:[#allocation10] sm:$0xff] 0.0
      %79 = vst [vmem:[#allocation10 + $0x8] sm:$0xff] 0.0
      %80 = vst [vmem:[#allocation10 + $0x10] sm:$0xff] 0.0
      %81 = vst [vmem:[#allocation10 + $0x18] sm:$0xff] 0.0
    $region41: #{tpu_custom_call.1} parent=1 // pred_fallthru
      _
    %v82 = vld [vmem:[#allocation2] sm:$0xff]
    %v83 = vld [vmem:[#allocation2 + $0x8] sm:$0xff]
    %v84 = vld [vmem:[#allocation2 + $0x10] sm:$0xff]
    %v85 = vld [vmem:[#allocation2 + $0x18] sm:$0xff]
    %v86 = vld [vmem:[#allocation5] sm:$0xff]
    %v87 = vld [vmem:[#allocation5 + $0x8] sm:$0xff]
    %v88 = vld [vmem:[#allocation5 + $0x10] sm:$0xff]
    %v89 = vld [vmem:[#allocation5 + $0x18] sm:$0xff]
    %v90 = vld [vmem:[#allocation5 + $0x20] sm:$0xff]
    %v91 = vld [vmem:[#allocation5 + $0x28] sm:$0xff]
    %v92 = vld [vmem:[#allocation5 + $0x30] sm:$0xff]
    %v93 = vld [vmem:[#allocation5 + $0x38] sm:$0xff]
    %v94 = vld [vmem:[#allocation5 + $0x40] sm:$0xff]
    %v95 = vld [vmem:[#allocation5 + $0x48] sm:$0xff]
    %v96 = vld [vmem:[#allocation5 + $0x50] sm:$0xff]
    %v97 = vld [vmem:[#allocation5 + $0x58] sm:$0xff]
    %v98 = vld [vmem:[#allocation5 + $0x60] sm:$0xff]
    %v99 = vld [vmem:[#allocation5 + $0x68] sm:$0xff]
    %v100 = vld [vmem:[#allocation5 + $0x70] sm:$0xff]
    %v101 = vld [vmem:[#allocation5 + $0x78] sm:$0xff]
    %v102 = vld [vmem:[#allocation5 + $0x80] sm:$0xff]
    %v103 = vld [vmem:[#allocation5 + $0x88] sm:$0xff]
    %v104 = vld [vmem:[#allocation5 + $0x90] sm:$0xff]
    %v105 = vld [vmem:[#allocation5 + $0x98] sm:$0xff]
    %v106 = vld [vmem:[#allocation5 + $0xa0] sm:$0xff]
    %v107 = vld [vmem:[#allocation5 + $0xa8] sm:$0xff]
    %v108 = vld [vmem:[#allocation5 + $0xb0] sm:$0xff]
    %v109 = vld [vmem:[#allocation5 + $0xb8] sm:$0xff]
    %v110 = vld [vmem:[#allocation5 + $0xc0] sm:$0xff]
    %v111 = vld [vmem:[#allocation5 + $0xc8] sm:$0xff]
    %v112 = vld [vmem:[#allocation5 + $0xd0] sm:$0xff]
    %v113 = vld [vmem:[#allocation5 + $0xd8] sm:$0xff]
    %v114 = vld [vmem:[#allocation5 + $0xe0] sm:$0xff]
    %v115 = vld [vmem:[#allocation5 + $0xe8] sm:$0xff]
    %v116 = vld [vmem:[#allocation5 + $0xf0] sm:$0xff]
    %v117 = vld [vmem:[#allocation5 + $0xf8] sm:$0xff]
    %v118 = vld [vmem:[#allocation5 + $0x100] sm:$0xff]
    %v119 = vld [vmem:[#allocation5 + $0x108] sm:$0xff]
    %v120 = vld [vmem:[#allocation5 + $0x110] sm:$0xff]
    %v121 = vld [vmem:[#allocation5 + $0x118] sm:$0xff]
    %v122 = vld [vmem:[#allocation5 + $0x120] sm:$0xff]
    %v123 = vld [vmem:[#allocation5 + $0x128] sm:$0xff]
    %v124 = vld [vmem:[#allocation5 + $0x130] sm:$0xff]
    %v125 = vld [vmem:[#allocation5 + $0x138] sm:$0xff]
    %v126 = vld [vmem:[#allocation5 + $0x140] sm:$0xff]
    %v127 = vld [vmem:[#allocation5 + $0x148] sm:$0xff]
    %v128 = vld [vmem:[#allocation5 + $0x150] sm:$0xff]
    %v129 = vld [vmem:[#allocation5 + $0x158] sm:$0xff]
    %v130 = vld [vmem:[#allocation5 + $0x160] sm:$0xff]
    %v131 = vld [vmem:[#allocation5 + $0x168] sm:$0xff]
    %v132 = vld [vmem:[#allocation5 + $0x170] sm:$0xff]
    %v133 = vld [vmem:[#allocation5 + $0x178] sm:$0xff]
    %v134 = vld [vmem:[#allocation5 + $0x180] sm:$0xff]
    %v135 = vld [vmem:[#allocation5 + $0x188] sm:$0xff]
    %v136 = vld [vmem:[#allocation5 + $0x190] sm:$0xff]
    %v137 = vld [vmem:[#allocation5 + $0x198] sm:$0xff]
    %v138 = vld [vmem:[#allocation5 + $0x1a0] sm:$0xff]
    %v139 = vld [vmem:[#allocation5 + $0x1a8] sm:$0xff]
    %v140 = vld [vmem:[#allocation5 + $0x1b0] sm:$0xff]
    %v141 = vld [vmem:[#allocation5 + $0x1b8] sm:$0xff]
    %v142 = vld [vmem:[#allocation5 + $0x1c0] sm:$0xff]
    %v143 = vld [vmem:[#allocation5 + $0x1c8] sm:$0xff]
    %v144 = vld [vmem:[#allocation5 + $0x1d0] sm:$0xff]
    %v145 = vld [vmem:[#allocation5 + $0x1d8] sm:$0xff]
    %v146 = vld [vmem:[#allocation5 + $0x1e0] sm:$0xff]
    %v147 = vld [vmem:[#allocation5 + $0x1e8] sm:$0xff]
    %v148 = vld [vmem:[#allocation5 + $0x1f0] sm:$0xff]
    %v149 = vld [vmem:[#allocation5 + $0x1f8] sm:$0xff]
    %v150 = vld [vmem:[#allocation5 + $0x200] sm:$0xff]
    %v151 = vld [vmem:[#allocation5 + $0x208] sm:$0xff]
    %v152 = vld [vmem:[#allocation5 + $0x210] sm:$0xff]
    %v153 = vld [vmem:[#allocation5 + $0x218] sm:$0xff]
    %v154 = vld [vmem:[#allocation5 + $0x220] sm:$0xff]
    %v155 = vld [vmem:[#allocation5 + $0x228] sm:$0xff]
    %v156 = vld [vmem:[#allocation5 + $0x230] sm:$0xff]
    %v157 = vld [vmem:[#allocation5 + $0x238] sm:$0xff]
    %v158 = vld [vmem:[#allocation5 + $0x240] sm:$0xff]
    %v159 = vld [vmem:[#allocation5 + $0x248] sm:$0xff]
    %v160 = vld [vmem:[#allocation5 + $0x250] sm:$0xff]
    %v161 = vld [vmem:[#allocation5 + $0x258] sm:$0xff]
    %v162 = vld [vmem:[#allocation5 + $0x260] sm:$0xff]
    %v163 = vld [vmem:[#allocation5 + $0x268] sm:$0xff]
    %v164 = vld [vmem:[#allocation5 + $0x270] sm:$0xff]
    %v165 = vld [vmem:[#allocation5 + $0x278] sm:$0xff]
    %v166 = vld [vmem:[#allocation5 + $0x280] sm:$0xff]
    %v167 = vld [vmem:[#allocation5 + $0x288] sm:$0xff]
    %v168 = vld [vmem:[#allocation5 + $0x290] sm:$0xff]
    %v169 = vld [vmem:[#allocation5 + $0x298] sm:$0xff]
    %v170 = vld [vmem:[#allocation5 + $0x2a0] sm:$0xff]
    %v171 = vld [vmem:[#allocation5 + $0x2a8] sm:$0xff]
    %v172 = vld [vmem:[#allocation5 + $0x2b0] sm:$0xff]
    %v173 = vld [vmem:[#allocation5 + $0x2b8] sm:$0xff]
    %v174 = vld [vmem:[#allocation5 + $0x2c0] sm:$0xff]
    %v175 = vld [vmem:[#allocation5 + $0x2c8] sm:$0xff]
    %v176 = vld [vmem:[#allocation5 + $0x2d0] sm:$0xff]
    %v177 = vld [vmem:[#allocation5 + $0x2d8] sm:$0xff]
    %v178 = vld [vmem:[#allocation5 + $0x2e0] sm:$0xff]
    %v179 = vld [vmem:[#allocation5 + $0x2e8] sm:$0xff]
    %v180 = vld [vmem:[#allocation5 + $0x2f0] sm:$0xff]
    %v181 = vld [vmem:[#allocation5 + $0x2f8] sm:$0xff]
    %v182 = vld [vmem:[#allocation5 + $0x300] sm:$0xff]
    %v183 = vld [vmem:[#allocation5 + $0x308] sm:$0xff]
    %v184 = vld [vmem:[#allocation5 + $0x310] sm:$0xff]
    %v185 = vld [vmem:[#allocation5 + $0x318] sm:$0xff]
    %v186 = vld [vmem:[#allocation5 + $0x320] sm:$0xff]
    %v187 = vld [vmem:[#allocation5 + $0x328] sm:$0xff]
    %v188 = vld [vmem:[#allocation5 + $0x330] sm:$0xff]
    %v189 = vld [vmem:[#allocation5 + $0x338] sm:$0xff]
    %v190 = vld [vmem:[#allocation5 + $0x340] sm:$0xff]
    %v191 = vld [vmem:[#allocation5 + $0x348] sm:$0xff]
    %v192 = vld [vmem:[#allocation5 + $0x350] sm:$0xff]
    %v193 = vld [vmem:[#allocation5 + $0x358] sm:$0xff]
    %v194 = vld [vmem:[#allocation5 + $0x360] sm:$0xff]
    %v195 = vld [vmem:[#allocation5 + $0x368] sm:$0xff]
    %v196 = vld [vmem:[#allocation5 + $0x370] sm:$0xff]
    %v197 = vld [vmem:[#allocation5 + $0x378] sm:$0xff]
    %v198 = vld [vmem:[#allocation5 + $0x380] sm:$0xff]
    %v199 = vld [vmem:[#allocation5 + $0x388] sm:$0xff]
    %v200 = vld [vmem:[#allocation5 + $0x390] sm:$0xff]
    %v201 = vld [vmem:[#allocation5 + $0x398] sm:$0xff]
    %v202 = vld [vmem:[#allocation5 + $0x3a0] sm:$0xff]
    %v203 = vld [vmem:[#allocation5 + $0x3a8] sm:$0xff]
    %v204 = vld [vmem:[#allocation5 + $0x3b0] sm:$0xff]
    %v205 = vld [vmem:[#allocation5 + $0x3b8] sm:$0xff]
    %v206 = vld [vmem:[#allocation5 + $0x3c0] sm:$0xff]
    %v207 = vld [vmem:[#allocation5 + $0x3c8] sm:$0xff]
    %v208 = vld [vmem:[#allocation5 + $0x3d0] sm:$0xff]
    %v209 = vld [vmem:[#allocation5 + $0x3d8] sm:$0xff]
    %v210 = vld [vmem:[#allocation5 + $0x3e0] sm:$0xff]
    %v211 = vld [vmem:[#allocation5 + $0x3e8] sm:$0xff]
    %v212 = vld [vmem:[#allocation5 + $0x3f0] sm:$0xff]
    %v213 = vld [vmem:[#allocation5 + $0x3f8] sm:$0xff]
    %v214 = vld [vmem:[#allocation5 + $0x400] sm:$0xff]
    %v215 = vld [vmem:[#allocation5 + $0x408] sm:$0xff]
    %v216 = vld [vmem:[#allocation5 + $0x410] sm:$0xff]
    %v217 = vld [vmem:[#allocation5 + $0x418] sm:$0xff]
    %v218 = vld [vmem:[#allocation5 + $0x420] sm:$0xff]
    %v219 = vld [vmem:[#allocation5 + $0x428] sm:$0xff]
    %v220 = vld [vmem:[#allocation5 + $0x430] sm:$0xff]
    %v221 = vld [vmem:[#allocation5 + $0x438] sm:$0xff]
    %v222 = vld [vmem:[#allocation5 + $0x440] sm:$0xff]
    %v223 = vld [vmem:[#allocation5 + $0x448] sm:$0xff]
    %v224 = vld [vmem:[#allocation5 + $0x450] sm:$0xff]
    %v225 = vld [vmem:[#allocation5 + $0x458] sm:$0xff]
    %v226 = vld [vmem:[#allocation5 + $0x460] sm:$0xff]
    %v227 = vld [vmem:[#allocation5 + $0x468] sm:$0xff]
    %v228 = vld [vmem:[#allocation5 + $0x470] sm:$0xff]
    %v229 = vld [vmem:[#allocation5 + $0x478] sm:$0xff]
    %v230 = vld [vmem:[#allocation5 + $0x480] sm:$0xff]
    %v231 = vld [vmem:[#allocation5 + $0x488] sm:$0xff]
    %v232 = vld [vmem:[#allocation5 + $0x490] sm:$0xff]
    %v233 = vld [vmem:[#allocation5 + $0x498] sm:$0xff]
    %v234 = vld [vmem:[#allocation5 + $0x4a0] sm:$0xff]
    %v235 = vld [vmem:[#allocation5 + $0x4a8] sm:$0xff]
    %v236 = vld [vmem:[#allocation5 + $0x4b0] sm:$0xff]
    %v237 = vld [vmem:[#allocation5 + $0x4b8] sm:$0xff]
    %v238 = vld [vmem:[#allocation5 + $0x4c0] sm:$0xff]
    %v239 = vld [vmem:[#allocation5 + $0x4c8] sm:$0xff]
    %v240 = vld [vmem:[#allocation5 + $0x4d0] sm:$0xff]
    %v241 = vld [vmem:[#allocation5 + $0x4d8] sm:$0xff]
    %v242 = vld [vmem:[#allocation5 + $0x4e0] sm:$0xff]
    %v243 = vld [vmem:[#allocation5 + $0x4e8] sm:$0xff]
    %v244 = vld [vmem:[#allocation5 + $0x4f0] sm:$0xff]
    %v245 = vld [vmem:[#allocation5 + $0x4f8] sm:$0xff]
    %v246 = vld [vmem:[#allocation5 + $0x500] sm:$0xff]
    %v247 = vld [vmem:[#allocation5 + $0x508] sm:$0xff]
    %v248 = vld [vmem:[#allocation5 + $0x510] sm:$0xff]
    %v249 = vld [vmem:[#allocation5 + $0x518] sm:$0xff]
    %v250 = vld [vmem:[#allocation5 + $0x520] sm:$0xff]
    %v251 = vld [vmem:[#allocation5 + $0x528] sm:$0xff]
    %v252 = vld [vmem:[#allocation5 + $0x530] sm:$0xff]
    %v253 = vld [vmem:[#allocation5 + $0x538] sm:$0xff]
    %v254 = vld [vmem:[#allocation5 + $0x540] sm:$0xff]
    %v255 = vld [vmem:[#allocation5 + $0x548] sm:$0xff]
    %v256 = vld [vmem:[#allocation5 + $0x550] sm:$0xff]
    %v257 = vld [vmem:[#allocation5 + $0x558] sm:$0xff]
    %v258 = vld [vmem:[#allocation5 + $0x560] sm:$0xff]
    %v259 = vld [vmem:[#allocation5 + $0x568] sm:$0xff]
    %v260 = vld [vmem:[#allocation5 + $0x570] sm:$0xff]
    %v261 = vld [vmem:[#allocation5 + $0x578] sm:$0xff]
    %v262 = vld [vmem:[#allocation5 + $0x580] sm:$0xff]
    %v263 = vld [vmem:[#allocation5 + $0x588] sm:$0xff]
    %v264 = vld [vmem:[#allocation5 + $0x590] sm:$0xff]
    %v265 = vld [vmem:[#allocation5 + $0x598] sm:$0xff]
    %v266 = vld [vmem:[#allocation5 + $0x5a0] sm:$0xff]
    %v267 = vld [vmem:[#allocation5 + $0x5a8] sm:$0xff]
    %v268 = vld [vmem:[#allocation5 + $0x5b0] sm:$0xff]
    %v269 = vld [vmem:[#allocation5 + $0x5b8] sm:$0xff]
    %v270 = vld [vmem:[#allocation5 + $0x5c0] sm:$0xff]
    %v271 = vld [vmem:[#allocation5 + $0x5c8] sm:$0xff]
    %v272 = vld [vmem:[#allocation5 + $0x5d0] sm:$0xff]
    %v273 = vld [vmem:[#allocation5 + $0x5d8] sm:$0xff]
    %v274 = vld [vmem:[#allocation5 + $0x5e0] sm:$0xff]
    %v275 = vld [vmem:[#allocation5 + $0x5e8] sm:$0xff]
    %v276 = vld [vmem:[#allocation5 + $0x5f0] sm:$0xff]
    %v277 = vld [vmem:[#allocation5 + $0x5f8] sm:$0xff]
    %v278 = vld [vmem:[#allocation5 + $0x600] sm:$0xff]
    %v279 = vld [vmem:[#allocation5 + $0x608] sm:$0xff]
    %v280 = vld [vmem:[#allocation5 + $0x610] sm:$0xff]
    %v281 = vld [vmem:[#allocation5 + $0x618] sm:$0xff]
    %v282 = vld [vmem:[#allocation5 + $0x620] sm:$0xff]
    %v283 = vld [vmem:[#allocation5 + $0x628] sm:$0xff]
    %v284 = vld [vmem:[#allocation5 + $0x630] sm:$0xff]
    %v285 = vld [vmem:[#allocation5 + $0x638] sm:$0xff]
    %v286 = vld [vmem:[#allocation5 + $0x640] sm:$0xff]
    %v287 = vld [vmem:[#allocation5 + $0x648] sm:$0xff]
    %v288 = vld [vmem:[#allocation5 + $0x650] sm:$0xff]
    %v289 = vld [vmem:[#allocation5 + $0x658] sm:$0xff]
    %v290 = vld [vmem:[#allocation5 + $0x660] sm:$0xff]
    %v291 = vld [vmem:[#allocation5 + $0x668] sm:$0xff]
    %v292 = vld [vmem:[#allocation5 + $0x670] sm:$0xff]
    %v293 = vld [vmem:[#allocation5 + $0x678] sm:$0xff]
    %v294 = vld [vmem:[#allocation5 + $0x680] sm:$0xff]
    %v295 = vld [vmem:[#allocation5 + $0x688] sm:$0xff]
    %v296 = vld [vmem:[#allocation5 + $0x690] sm:$0xff]
    %v297 = vld [vmem:[#allocation5 + $0x698] sm:$0xff]
    %v298 = vld [vmem:[#allocation5 + $0x6a0] sm:$0xff]
    %v299 = vld [vmem:[#allocation5 + $0x6a8] sm:$0xff]
    %v300 = vld [vmem:[#allocation5 + $0x6b0] sm:$0xff]
    %v301 = vld [vmem:[#allocation5 + $0x6b8] sm:$0xff]
    %v302 = vld [vmem:[#allocation5 + $0x6c0] sm:$0xff]
    %v303 = vld [vmem:[#allocation5 + $0x6c8] sm:$0xff]
    %v304 = vld [vmem:[#allocation5 + $0x6d0] sm:$0xff]
    %v305 = vld [vmem:[#allocation5 + $0x6d8] sm:$0xff]
    %v306 = vld [vmem:[#allocation5 + $0x6e0] sm:$0xff]
    %v307 = vld [vmem:[#allocation5 + $0x6e8] sm:$0xff]
    %v308 = vld [vmem:[#allocation5 + $0x6f0] sm:$0xff]
    %v309 = vld [vmem:[#allocation5 + $0x6f8] sm:$0xff]
    %v310 = vld [vmem:[#allocation5 + $0x700] sm:$0xff]
    %v311 = vld [vmem:[#allocation5 + $0x708] sm:$0xff]
    %v312 = vld [vmem:[#allocation5 + $0x710] sm:$0xff]
    %v313 = vld [vmem:[#allocation5 + $0x718] sm:$0xff]
    %v314 = vld [vmem:[#allocation5 + $0x720] sm:$0xff]
    %v315 = vld [vmem:[#allocation5 + $0x728] sm:$0xff]
    %v316 = vld [vmem:[#allocation5 + $0x730] sm:$0xff]
    %v317 = vld [vmem:[#allocation5 + $0x738] sm:$0xff]
    %v318 = vld [vmem:[#allocation5 + $0x740] sm:$0xff]
    %v319 = vld [vmem:[#allocation5 + $0x748] sm:$0xff]
    %v320 = vld [vmem:[#allocation5 + $0x750] sm:$0xff]
    %v321 = vld [vmem:[#allocation5 + $0x758] sm:$0xff]
    %v322 = vld [vmem:[#allocation5 + $0x760] sm:$0xff]
    %v323 = vld [vmem:[#allocation5 + $0x768] sm:$0xff]
    %v324 = vld [vmem:[#allocation5 + $0x770] sm:$0xff]
    %v325 = vld [vmem:[#allocation5 + $0x778] sm:$0xff]
    %v326 = vld [vmem:[#allocation5 + $0x780] sm:$0xff]
    %v327 = vld [vmem:[#allocation5 + $0x788] sm:$0xff]
    %v328 = vld [vmem:[#allocation5 + $0x790] sm:$0xff]
    %v329 = vld [vmem:[#allocation5 + $0x798] sm:$0xff]
    %v330 = vld [vmem:[#allocation5 + $0x7a0] sm:$0xff]
    %v331 = vld [vmem:[#allocation5 + $0x7a8] sm:$0xff]
    %v332 = vld [vmem:[#allocation5 + $0x7b0] sm:$0xff]
    %v333 = vld [vmem:[#allocation5 + $0x7b8] sm:$0xff]
    %v334 = vld [vmem:[#allocation5 + $0x7c0] sm:$0xff]
    %v335 = vld [vmem:[#allocation5 + $0x7c8] sm:$0xff]
    %v336 = vld [vmem:[#allocation5 + $0x7d0] sm:$0xff]
    %v337 = vld [vmem:[#allocation5 + $0x7d8] sm:$0xff]
    %v338 = vld [vmem:[#allocation5 + $0x7e0] sm:$0xff]
    %v339 = vld [vmem:[#allocation5 + $0x7e8] sm:$0xff]
    %v340 = vld [vmem:[#allocation5 + $0x7f0] sm:$0xff]
    %v341 = vld [vmem:[#allocation5 + $0x7f8] sm:$0xff]
    %s342 = smul.u32 0, 8
    %s343 = scalar_lea.vmem [#allocation7], %s342
    %v344 = vld [vmem:[%s343] sm:$0xff]
    %v346 = vlaneseq
    %v347 = vshrl.u32 %v346, 7
    %v348 = vsub.s32 0, %v347
    %v349 = vrot.slane %v344, %v348
    %v350 = vlaneseq
    %v351 = vshrl.u32 %v350, 7
    %v352 = vsub.s32 1, %v351
    %v353 = vrot.slane %v344, %v352
    %v354 = vlaneseq
    %v355 = vshrl.u32 %v354, 7
    %v356 = vsub.s32 2, %v355
    %v357 = vrot.slane %v344, %v356
    %v358 = vlaneseq
    %v359 = vshrl.u32 %v358, 7
    %v360 = vsub.s32 3, %v359
    %v361 = vrot.slane %v344, %v360
    %v362 = vlaneseq
    %v363 = vshrl.u32 %v362, 7
    %v364 = vsub.s32 4, %v363
    %v365 = vrot.slane %v344, %v364
    %v366 = vlaneseq
    %v367 = vshrl.u32 %v366, 7
    %v368 = vsub.s32 5, %v367
    %v369 = vrot.slane %v344, %v368
    %v370 = vlaneseq
    %v371 = vshrl.u32 %v370, 7
    %v372 = vsub.s32 6, %v371
    %v373 = vrot.slane %v344, %v372
    %v374 = vlaneseq
    %v375 = vshrl.u32 %v374, 7
    %v376 = vsub.s32 7, %v375
    %v377 = vrot.slane %v344, %v376
    %386 = vmatprep.subr.mxu0 %v87
    %387 = vmatpush1.msra.mxu0 %v86
    %388 = vmatprep.subr.mxu0 %v95
    %389 = vmatpush1.msra.mxu0 %v94
    %390 = vmatprep.subr.mxu0 %v103
    %391 = vmatpush1.msra.mxu0 %v102
    %392 = vmatprep.subr.mxu0 %v111
    %393 = vmatpush1.msra.mxu0 %v110
    %394 = vmatprep.subr.mxu0 %v119
    %395 = vmatpush1.msra.mxu0 %v118
    %396 = vmatprep.subr.mxu0 %v127
    %397 = vmatpush1.msra.mxu0 %v126
    %398 = vmatprep.subr.mxu0 %v135
    %399 = vmatpush1.msra.mxu0 %v134
    %400 = vmatprep.subr.mxu0 %v143
    %401 = vmatpush1.msra.mxu0 %v142
    %402 = vmatprep.subr.mxu0 %v151
    %403 = vmatpush1.msra.mxu0 %v150
    %404 = vmatprep.subr.mxu0 %v159
    %405 = vmatpush1.msra.mxu0 %v158
    %406 = vmatprep.subr.mxu0 %v167
    %407 = vmatpush1.msra.mxu0 %v166
    %408 = vmatprep.subr.mxu0 %v175
    %409 = vmatpush1.msra.mxu0 %v174
    %410 = vmatprep.subr.mxu0 %v183
    %411 = vmatpush1.msra.mxu0 %v182
    %412 = vmatprep.subr.mxu0 %v191
    %413 = vmatpush1.msra.mxu0 %v190
    %414 = vmatprep.subr.mxu0 %v199
    %415 = vmatpush1.msra.mxu0 %v198
    %416 = vmatprep.subr.mxu0 %v207
    %417 = vmatpush1.msra.mxu0 %v206
    %418 = vmatprep.subr.mxu0 %v215
    %419 = vmatpush1.msra.mxu0 %v214
    %420 = vmatprep.subr.mxu0 %v223
    %421 = vmatpush1.msra.mxu0 %v222
    %422 = vmatprep.subr.mxu0 %v231
    %423 = vmatpush1.msra.mxu0 %v230
    %424 = vmatprep.subr.mxu0 %v239
    %425 = vmatpush1.msra.mxu0 %v238
    %426 = vmatprep.subr.mxu0 %v247
    %427 = vmatpush1.msra.mxu0 %v246
    %428 = vmatprep.subr.mxu0 %v255
    %429 = vmatpush1.msra.mxu0 %v254
    %430 = vmatprep.subr.mxu0 %v263
    %431 = vmatpush1.msra.mxu0 %v262
    %432 = vmatprep.subr.mxu0 %v271
    %433 = vmatpush1.msra.mxu0 %v270
    %434 = vmatprep.subr.mxu0 %v279
    %435 = vmatpush1.msra.mxu0 %v278
    %436 = vmatprep.subr.mxu0 %v287
    %437 = vmatpush1.msra.mxu0 %v286
    %438 = vmatprep.subr.mxu0 %v295
    %439 = vmatpush1.msra.mxu0 %v294
    %440 = vmatprep.subr.mxu0 %v303
    %441 = vmatpush1.msra.mxu0 %v302
    %442 = vmatprep.subr.mxu0 %v311
    %443 = vmatpush1.msra.mxu0 %v310
    %444 = vmatprep.subr.mxu0 %v319
    %445 = vmatpush1.msra.mxu0 %v318
    %446 = vmatprep.subr.mxu0 %v327
    %447 = vmatpush1.msra.mxu0 %v326
    %448 = vmatprep.subr.mxu0 %v335
    %449 = vmatpush1.msra.mxu0 %v334
    %450 = vmatprep.mubr.f32.mxu0 %v83
    %451 = vmatmul.mubr.f32.gmra.mrb[0].mxu0 %v82
    %v452 = vpop.f32.mrb[0].mxu0
    %v453 = vadd.f32 %v349, %v452
    %v454 = vpop.f32.mrb[0].mxu0
    %v455 = vadd.f32 %v353, %v454
    %456 = vmatprep.mubr.f32.mxu0 %v85
    %457 = vmatmul.mubr.f32.gmra.mrb[0].mxu0 %v84
    %v458 = vpop.f32.mrb[0].mxu0
    %v459 = vadd.f32 %v349, %v458
    %v460 = vpop.f32.mrb[0].mxu0
    %v461 = vadd.f32 %v353, %v460
    %462 = vdwg.mxu0
    %463 = vmatprep.subr.mxu0 %v89
    %464 = vmatpush1.msra.mxu0 %v88
    %465 = vmatprep.subr.mxu0 %v97
    %466 = vmatpush1.msra.mxu0 %v96
    %467 = vmatprep.subr.mxu0 %v105
    %468 = vmatpush1.msra.mxu0 %v104
    %469 = vmatprep.subr.mxu0 %v113
    %470 = vmatpush1.msra.mxu0 %v112
    %471 = vmatprep.subr.mxu0 %v121
    %472 = vmatpush1.msra.mxu0 %v120
    %473 = vmatprep.subr.mxu0 %v129
    %474 = vmatpush1.msra.mxu0 %v128
    %475 = vmatprep.subr.mxu0 %v137
    %476 = vmatpush1.msra.mxu0 %v136
    %477 = vmatprep.subr.mxu0 %v145
    %478 = vmatpush1.msra.mxu0 %v144
    %479 = vmatprep.subr.mxu0 %v153
    %480 = vmatpush1.msra.mxu0 %v152
    %481 = vmatprep.subr.mxu0 %v161
    %482 = vmatpush1.msra.mxu0 %v160
    %483 = vmatprep.subr.mxu0 %v169
    %484 = vmatpush1.msra.mxu0 %v168
    %485 = vmatprep.subr.mxu0 %v177
    %486 = vmatpush1.msra.mxu0 %v176
    %487 = vmatprep.subr.mxu0 %v185
    %488 = vmatpush1.msra.mxu0 %v184
    %489 = vmatprep.subr.mxu0 %v193
    %490 = vmatpush1.msra.mxu0 %v192
    %491 = vmatprep.subr.mxu0 %v201
    %492 = vmatpush1.msra.mxu0 %v200
    %493 = vmatprep.subr.mxu0 %v209
    %494 = vmatpush1.msra.mxu0 %v208
    %495 = vmatprep.subr.mxu0 %v217
    %496 = vmatpush1.msra.mxu0 %v216
    %497 = vmatprep.subr.mxu0 %v225
    %498 = vmatpush1.msra.mxu0 %v224
    %499 = vmatprep.subr.mxu0 %v233
    %500 = vmatpush1.msra.mxu0 %v232
    %501 = vmatprep.subr.mxu0 %v241
    %502 = vmatpush1.msra.mxu0 %v240
    %503 = vmatprep.subr.mxu0 %v249
    %504 = vmatpush1.msra.mxu0 %v248
    %505 = vmatprep.subr.mxu0 %v257
    %506 = vmatpush1.msra.mxu0 %v256
    %507 = vmatprep.subr.mxu0 %v265
    %508 = vmatpush1.msra.mxu0 %v264
    %509 = vmatprep.subr.mxu0 %v273
    %510 = vmatpush1.msra.mxu0 %v272
    %511 = vmatprep.subr.mxu0 %v281
    %512 = vmatpush1.msra.mxu0 %v280
    %513 = vmatprep.subr.mxu0 %v289
    %514 = vmatpush1.msra.mxu0 %v288
    %515 = vmatprep.subr.mxu0 %v297
    %516 = vmatpush1.msra.mxu0 %v296
    %517 = vmatprep.subr.mxu0 %v305
    %518 = vmatpush1.msra.mxu0 %v304
    %519 = vmatprep.subr.mxu0 %v313
    %520 = vmatpush1.msra.mxu0 %v312
    %521 = vmatprep.subr.mxu0 %v321
    %522 = vmatpush1.msra.mxu0 %v320
    %523 = vmatprep.subr.mxu0 %v329
    %524 = vmatpush1.msra.mxu0 %v328
    %525 = vmatprep.subr.mxu0 %v337
    %526 = vmatpush1.msra.mxu0 %v336
    %527 = vmatprep.mubr.f32.mxu0 %v83
    %528 = vmatmul.mubr.f32.gmra.mrb[0].mxu0 %v82
    %v529 = vpop.f32.mrb[0].mxu0
    %v530 = vadd.f32 %v357, %v529
    %v531 = vpop.f32.mrb[0].mxu0
    %v532 = vadd.f32 %v361, %v531
    %533 = vmatprep.mubr.f32.mxu0 %v85
    %534 = vmatmul.mubr.f32.gmra.mrb[0].mxu0 %v84
    %v535 = vpop.f32.mrb[0].mxu0
    %v536 = vadd.f32 %v357, %v535
    %v537 = vpop.f32.mrb[0].mxu0
    %v538 = vadd.f32 %v361, %v537
    %539 = vdwg.mxu0
    %540 = vmatprep.subr.mxu0 %v91
    %541 = vmatpush1.msra.mxu0 %v90
    %542 = vmatprep.subr.mxu0 %v99
    %543 = vmatpush1.msra.mxu0 %v98
    %544 = vmatprep.subr.mxu0 %v107
    %545 = vmatpush1.msra.mxu0 %v106
    %546 = vmatprep.subr.mxu0 %v115
    %547 = vmatpush1.msra.mxu0 %v114
    %548 = vmatprep.subr.mxu0 %v123
    %549 = vmatpush1.msra.mxu0 %v122
    %550 = vmatprep.subr.mxu0 %v131
    %551 = vmatpush1.msra.mxu0 %v130
    %552 = vmatprep.subr.mxu0 %v139
    %553 = vmatpush1.msra.mxu0 %v138
    %554 = vmatprep.subr.mxu0 %v147
    %555 = vmatpush1.msra.mxu0 %v146
    %556 = vmatprep.subr.mxu0 %v155
    %557 = vmatpush1.msra.mxu0 %v154
    %558 = vmatprep.subr.mxu0 %v163
    %559 = vmatpush1.msra.mxu0 %v162
    %560 = vmatprep.subr.mxu0 %v171
    %561 = vmatpush1.msra.mxu0 %v170
    %562 = vmatprep.subr.mxu0 %v179
    %563 = vmatpush1.msra.mxu0 %v178
    %564 = vmatprep.subr.mxu0 %v187
    %565 = vmatpush1.msra.mxu0 %v186
    %566 = vmatprep.subr.mxu0 %v195
    %567 = vmatpush1.msra.mxu0 %v194
    %568 = vmatprep.subr.mxu0 %v203
    %569 = vmatpush1.msra.mxu0 %v202
    %570 = vmatprep.subr.mxu0 %v211
    %571 = vmatpush1.msra.mxu0 %v210
    %572 = vmatprep.subr.mxu0 %v219
    %573 = vmatpush1.msra.mxu0 %v218
    %574 = vmatprep.subr.mxu0 %v227
    %575 = vmatpush1.msra.mxu0 %v226
    %576 = vmatprep.subr.mxu0 %v235
    %577 = vmatpush1.msra.mxu0 %v234
    %578 = vmatprep.subr.mxu0 %v243
    %579 = vmatpush1.msra.mxu0 %v242
    %580 = vmatprep.subr.mxu0 %v251
    %581 = vmatpush1.msra.mxu0 %v250
    %582 = vmatprep.subr.mxu0 %v259
    %583 = vmatpush1.msra.mxu0 %v258
    %584 = vmatprep.subr.mxu0 %v267
    %585 = vmatpush1.msra.mxu0 %v266
    %586 = vmatprep.subr.mxu0 %v275
    %587 = vmatpush1.msra.mxu0 %v274
    %588 = vmatprep.subr.mxu0 %v283
    %589 = vmatpush1.msra.mxu0 %v282
    %590 = vmatprep.subr.mxu0 %v291
    %591 = vmatpush1.msra.mxu0 %v290
    %592 = vmatprep.subr.mxu0 %v299
    %593 = vmatpush1.msra.mxu0 %v298
    %594 = vmatprep.subr.mxu0 %v307
    %595 = vmatpush1.msra.mxu0 %v306
    %596 = vmatprep.subr.mxu0 %v315
    %597 = vmatpush1.msra.mxu0 %v314
    %598 = vmatprep.subr.mxu0 %v323
    %599 = vmatpush1.msra.mxu0 %v322
    %600 = vmatprep.subr.mxu0 %v331
    %601 = vmatpush1.msra.mxu0 %v330
    %602 = vmatprep.subr.mxu0 %v339
    %603 = vmatpush1.msra.mxu0 %v338
    %604 = vmatprep.mubr.f32.mxu0 %v83
    %605 = vmatmul.mubr.f32.gmra.mrb[0].mxu0 %v82
    %v606 = vpop.f32.mrb[0].mxu0
    %v607 = vadd.f32 %v365, %v606
    %v608 = vpop.f32.mrb[0].mxu0
    %v609 = vadd.f32 %v369, %v608
    %610 = vmatprep.mubr.f32.mxu0 %v85
    %611 = vmatmul.mubr.f32.gmra.mrb[0].mxu0 %v84
    %v612 = vpop.f32.mrb[0].mxu0
    %v613 = vadd.f32 %v365, %v612
    %v614 = vpop.f32.mrb[0].mxu0
    %v615 = vadd.f32 %v369, %v614
    %616 = vdwg.mxu0
    %617 = vmatprep.subr.mxu0 %v93
    %618 = vmatpush1.msra.mxu0 %v92
    %619 = vmatprep.subr.mxu0 %v101
    %620 = vmatpush1.msra.mxu0 %v100
    %621 = vmatprep.subr.mxu0 %v109
    %622 = vmatpush1.msra.mxu0 %v108
    %623 = vmatprep.subr.mxu0 %v117
    %624 = vmatpush1.msra.mxu0 %v116
    %625 = vmatprep.subr.mxu0 %v125
    %626 = vmatpush1.msra.mxu0 %v124
    %627 = vmatprep.subr.mxu0 %v133
    %628 = vmatpush1.msra.mxu0 %v132
    %629 = vmatprep.subr.mxu0 %v141
    %630 = vmatpush1.msra.mxu0 %v140
    %631 = vmatprep.subr.mxu0 %v149
    %632 = vmatpush1.msra.mxu0 %v148
    %633 = vmatprep.subr.mxu0 %v157
    %634 = vmatpush1.msra.mxu0 %v156
    %635 = vmatprep.subr.mxu0 %v165
    %636 = vmatpush1.msra.mxu0 %v164
    %637 = vmatprep.subr.mxu0 %v173
    %638 = vmatpush1.msra.mxu0 %v172
    %639 = vmatprep.subr.mxu0 %v181
    %640 = vmatpush1.msra.mxu0 %v180
    %641 = vmatprep.subr.mxu0 %v189
    %642 = vmatpush1.msra.mxu0 %v188
    %643 = vmatprep.subr.mxu0 %v197
    %644 = vmatpush1.msra.mxu0 %v196
    %645 = vmatprep.subr.mxu0 %v205
    %646 = vmatpush1.msra.mxu0 %v204
    %647 = vmatprep.subr.mxu0 %v213
    %648 = vmatpush1.msra.mxu0 %v212
    %649 = vmatprep.subr.mxu0 %v221
    %650 = vmatpush1.msra.mxu0 %v220
    %651 = vmatprep.subr.mxu0 %v229
    %652 = vmatpush1.msra.mxu0 %v228
    %653 = vmatprep.subr.mxu0 %v237
    %654 = vmatpush1.msra.mxu0 %v236
    %655 = vmatprep.subr.mxu0 %v245
    %656 = vmatpush1.msra.mxu0 %v244
    %657 = vmatprep.subr.mxu0 %v253
    %658 = vmatpush1.msra.mxu0 %v252
    %659 = vmatprep.subr.mxu0 %v261
    %660 = vmatpush1.msra.mxu0 %v260
    %661 = vmatprep.subr.mxu0 %v269
    %662 = vmatpush1.msra.mxu0 %v268
    %663 = vmatprep.subr.mxu0 %v277
    %664 = vmatpush1.msra.mxu0 %v276
    %665 = vmatprep.subr.mxu0 %v285
    %666 = vmatpush1.msra.mxu0 %v284
    %667 = vmatprep.subr.mxu0 %v293
    %668 = vmatpush1.msra.mxu0 %v292
    %669 = vmatprep.subr.mxu0 %v301
    %670 = vmatpush1.msra.mxu0 %v300
    %671 = vmatprep.subr.mxu0 %v309
    %672 = vmatpush1.msra.mxu0 %v308
    %673 = vmatprep.subr.mxu0 %v317
    %674 = vmatpush1.msra.mxu0 %v316
    %675 = vmatprep.subr.mxu0 %v325
    %676 = vmatpush1.msra.mxu0 %v324
    %677 = vmatprep.subr.mxu0 %v333
    %678 = vmatpush1.msra.mxu0 %v332
    %679 = vmatprep.subr.mxu0 %v341
    %680 = vmatpush1.msra.mxu0 %v340
    %681 = vmatprep.mubr.f32.mxu0 %v83
    %682 = vmatmul.mubr.f32.gmra.mrb[0].mxu0 %v82
    %v683 = vpop.f32.mrb[0].mxu0
    %v684 = vadd.f32 %v373, %v683
    %v685 = vpop.f32.mrb[0].mxu0
    %v686 = vadd.f32 %v377, %v685
    %687 = vmatprep.mubr.f32.mxu0 %v85
    %688 = vmatmul.mubr.f32.gmra.mrb[0].mxu0 %v84
    %v689 = vpop.f32.mrb[0].mxu0
    %v690 = vadd.f32 %v373, %v689
    %v691 = vpop.f32.mrb[0].mxu0
    %v692 = vadd.f32 %v377, %v691
    %693 = vdwg.mxu0
    %v694 = vmul.f32 %v453, 0.5
    %v695 = vmul.f32 %v455, 0.5
    %v696 = vmul.f32 %v530, 0.5
    %v697 = vmul.f32 %v532, 0.5
    %v698 = vmul.f32 %v607, 0.5
    %v699 = vmul.f32 %v609, 0.5
    %v700 = vmul.f32 %v684, 0.5
    %v701 = vmul.f32 %v686, 0.5
    %v702 = vmul.f32 %v459, 0.5
    %v703 = vmul.f32 %v461, 0.5
    %v704 = vmul.f32 %v536, 0.5
    %v705 = vmul.f32 %v538, 0.5
    %v706 = vmul.f32 %v613, 0.5
    %v707 = vmul.f32 %v615, 0.5
    %v708 = vmul.f32 %v690, 0.5
    %v709 = vmul.f32 %v692, 0.5
    %v710 = vmul.f32 %v453, 0.70710677
    %v711 = vmul.f32 %v455, 0.70710677
    %v712 = vmul.f32 %v530, 0.70710677
    %v713 = vmul.f32 %v532, 0.70710677
    %v714 = vmul.f32 %v607, 0.70710677
    %v715 = vmul.f32 %v609, 0.70710677
    %v716 = vmul.f32 %v684, 0.70710677
    %v717 = vmul.f32 %v686, 0.70710677
    %v718 = vmul.f32 %v459, 0.70710677
    %v719 = vmul.f32 %v461, 0.70710677
    %v720 = vmul.f32 %v536, 0.70710677
    %v721 = vmul.f32 %v538, 0.70710677
    %v722 = vmul.f32 %v613, 0.70710677
    %v723 = vmul.f32 %v615, 0.70710677
    %v724 = vmul.f32 %v690, 0.70710677
    %v725 = vmul.f32 %v692, 0.70710677
    %v726 = verf.f32.pop %v710
    %v727 = verf.f32.pop %v711
    %v728 = verf.f32.pop %v712
    %v729 = verf.f32.pop %v713
    %v730 = verf.f32.pop %v714
    %v731 = verf.f32.pop %v715
    %v732 = verf.f32.pop %v716
    %v733 = verf.f32.pop %v717
    %v734 = verf.f32.pop %v718
    %v735 = verf.f32.pop %v719
    %v736 = verf.f32.pop %v720
    %v737 = verf.f32.pop %v721
    %v738 = verf.f32.pop %v722
    %v739 = verf.f32.pop %v723
    %v740 = verf.f32.pop %v724
    %v741 = verf.f32.pop %v725
    %v742 = vadd.f32 %v726, 1.0
    %v743 = vadd.f32 %v727, 1.0
    %v744 = vadd.f32 %v728, 1.0
    %v745 = vadd.f32 %v729, 1.0
    %v746 = vadd.f32 %v730, 1.0
    %v747 = vadd.f32 %v731, 1.0
    %v748 = vadd.f32 %v732, 1.0
    %v749 = vadd.f32 %v733, 1.0
    %v750 = vadd.f32 %v734, 1.0
    %v751 = vadd.f32 %v735, 1.0
    %v752 = vadd.f32 %v736, 1.0
    %v753 = vadd.f32 %v737, 1.0
    %v754 = vadd.f32 %v738, 1.0
    %v755 = vadd.f32 %v739, 1.0
    %v756 = vadd.f32 %v740, 1.0
    %v757 = vadd.f32 %v741, 1.0
    %v758 = vmul.f32 %v694, %v742
    %v759 = vmul.f32 %v695, %v743
    %v760 = vmul.f32 %v696, %v744
    %v761 = vmul.f32 %v697, %v745
    %v762 = vmul.f32 %v698, %v746
    %v763 = vmul.f32 %v699, %v747
    %v764 = vmul.f32 %v700, %v748
    %v765 = vmul.f32 %v701, %v749
    %v766 = vmul.f32 %v702, %v750
    %v767 = vmul.f32 %v703, %v751
    %v768 = vmul.f32 %v704, %v752
    %v769 = vmul.f32 %v705, %v753
    %v770 = vmul.f32 %v706, %v754
    %v771 = vmul.f32 %v707, %v755
    %v772 = vmul.f32 %v708, %v756
    %v773 = vmul.f32 %v709, %v757
    %v774 = vld [vmem:[#allocation10] sm:$0xff]
    %v775 = vld [vmem:[#allocation10 + $0x8] sm:$0xff]
    %v776 = vld [vmem:[#allocation10 + $0x10] sm:$0xff]
    %v777 = vld [vmem:[#allocation10 + $0x18] sm:$0xff]
    %v778 = vld [vmem:[#allocation8] sm:$0xff]
    %v779 = vld [vmem:[#allocation8 + $0x8] sm:$0xff]
    %v780 = vld [vmem:[#allocation8 + $0x10] sm:$0xff]
    %v781 = vld [vmem:[#allocation8 + $0x18] sm:$0xff]
    %v782 = vld [vmem:[#allocation8 + $0x20] sm:$0xff]
    %v783 = vld [vmem:[#allocation8 + $0x28] sm:$0xff]
    %v784 = vld [vmem:[#allocation8 + $0x30] sm:$0xff]
    %v785 = vld [vmem:[#allocation8 + $0x38] sm:$0xff]
    %v786 = vld [vmem:[#allocation8 + $0x40] sm:$0xff]
    %v787 = vld [vmem:[#allocation8 + $0x48] sm:$0xff]
    %v788 = vld [vmem:[#allocation8 + $0x50] sm:$0xff]
    %v789 = vld [vmem:[#allocation8 + $0x58] sm:$0xff]
    %v790 = vld [vmem:[#allocation8 + $0x60] sm:$0xff]
    %v791 = vld [vmem:[#allocation8 + $0x68] sm:$0xff]
    %v792 = vld [vmem:[#allocation8 + $0x70] sm:$0xff]
    %v793 = vld [vmem:[#allocation8 + $0x78] sm:$0xff]
    %v794 = vld [vmem:[#allocation8 + $0x80] sm:$0xff]
    %v795 = vld [vmem:[#allocation8 + $0x88] sm:$0xff]
    %v796 = vld [vmem:[#allocation8 + $0x90] sm:$0xff]
    %v797 = vld [vmem:[#allocation8 + $0x98] sm:$0xff]
    %v798 = vld [vmem:[#allocation8 + $0xa0] sm:$0xff]
    %v799 = vld [vmem:[#allocation8 + $0xa8] sm:$0xff]
    %v800 = vld [vmem:[#allocation8 + $0xb0] sm:$0xff]
    %v801 = vld [vmem:[#allocation8 + $0xb8] sm:$0xff]
    %v802 = vld [vmem:[#allocation8 + $0xc0] sm:$0xff]
    %v803 = vld [vmem:[#allocation8 + $0xc8] sm:$0xff]
    %v804 = vld [vmem:[#allocation8 + $0xd0] sm:$0xff]
    %v805 = vld [vmem:[#allocation8 + $0xd8] sm:$0xff]
    %v806 = vld [vmem:[#allocation8 + $0xe0] sm:$0xff]
    %v807 = vld [vmem:[#allocation8 + $0xe8] sm:$0xff]
    %v808 = vld [vmem:[#allocation8 + $0xf0] sm:$0xff]
    %v809 = vld [vmem:[#allocation8 + $0xf8] sm:$0xff]
    %v810 = vld [vmem:[#allocation8 + $0x100] sm:$0xff]
    %v811 = vld [vmem:[#allocation8 + $0x108] sm:$0xff]
    %v812 = vld [vmem:[#allocation8 + $0x110] sm:$0xff]
    %v813 = vld [vmem:[#allocation8 + $0x118] sm:$0xff]
    %v814 = vld [vmem:[#allocation8 + $0x120] sm:$0xff]
    %v815 = vld [vmem:[#allocation8 + $0x128] sm:$0xff]
    %v816 = vld [vmem:[#allocation8 + $0x130] sm:$0xff]
    %v817 = vld [vmem:[#allocation8 + $0x138] sm:$0xff]
    %v818 = vld [vmem:[#allocation8 + $0x140] sm:$0xff]
    %v819 = vld [vmem:[#allocation8 + $0x148] sm:$0xff]
    %v820 = vld [vmem:[#allocation8 + $0x150] sm:$0xff]
    %v821 = vld [vmem:[#allocation8 + $0x158] sm:$0xff]
    %v822 = vld [vmem:[#allocation8 + $0x160] sm:$0xff]
    %v823 = vld [vmem:[#allocation8 + $0x168] sm:$0xff]
    %v824 = vld [vmem:[#allocation8 + $0x170] sm:$0xff]
    %v825 = vld [vmem:[#allocation8 + $0x178] sm:$0xff]
    %v826 = vld [vmem:[#allocation8 + $0x180] sm:$0xff]
    %v827 = vld [vmem:[#allocation8 + $0x188] sm:$0xff]
    %v828 = vld [vmem:[#allocation8 + $0x190] sm:$0xff]
    %v829 = vld [vmem:[#allocation8 + $0x198] sm:$0xff]
    %v830 = vld [vmem:[#allocation8 + $0x1a0] sm:$0xff]
    %v831 = vld [vmem:[#allocation8 + $0x1a8] sm:$0xff]
    %v832 = vld [vmem:[#allocation8 + $0x1b0] sm:$0xff]
    %v833 = vld [vmem:[#allocation8 + $0x1b8] sm:$0xff]
    %v834 = vld [vmem:[#allocation8 + $0x1c0] sm:$0xff]
    %v835 = vld [vmem:[#allocation8 + $0x1c8] sm:$0xff]
    %v836 = vld [vmem:[#allocation8 + $0x1d0] sm:$0xff]
    %v837 = vld [vmem:[#allocation8 + $0x1d8] sm:$0xff]
    %v838 = vld [vmem:[#allocation8 + $0x1e0] sm:$0xff]
    %v839 = vld [vmem:[#allocation8 + $0x1e8] sm:$0xff]
    %v840 = vld [vmem:[#allocation8 + $0x1f0] sm:$0xff]
    %v841 = vld [vmem:[#allocation8 + $0x1f8] sm:$0xff]
    %v842 = vld [vmem:[#allocation8 + $0x200] sm:$0xff]
    %v843 = vld [vmem:[#allocation8 + $0x208] sm:$0xff]
    %v844 = vld [vmem:[#allocation8 + $0x210] sm:$0xff]
    %v845 = vld [vmem:[#allocation8 + $0x218] sm:$0xff]
    %v846 = vld [vmem:[#allocation8 + $0x220] sm:$0xff]
    %v847 = vld [vmem:[#allocation8 + $0x228] sm:$0xff]
    %v848 = vld [vmem:[#allocation8 + $0x230] sm:$0xff]
    %v849 = vld [vmem:[#allocation8 + $0x238] sm:$0xff]
    %v850 = vld [vmem:[#allocation8 + $0x240] sm:$0xff]
    %v851 = vld [vmem:[#allocation8 + $0x248] sm:$0xff]
    %v852 = vld [vmem:[#allocation8 + $0x250] sm:$0xff]
    %v853 = vld [vmem:[#allocation8 + $0x258] sm:$0xff]
    %v854 = vld [vmem:[#allocation8 + $0x260] sm:$0xff]
    %v855 = vld [vmem:[#allocation8 + $0x268] sm:$0xff]
    %v856 = vld [vmem:[#allocation8 + $0x270] sm:$0xff]
    %v857 = vld [vmem:[#allocation8 + $0x278] sm:$0xff]
    %v858 = vld [vmem:[#allocation8 + $0x280] sm:$0xff]
    %v859 = vld [vmem:[#allocation8 + $0x288] sm:$0xff]
    %v860 = vld [vmem:[#allocation8 + $0x290] sm:$0xff]
    %v861 = vld [vmem:[#allocation8 + $0x298] sm:$0xff]
    %v862 = vld [vmem:[#allocation8 + $0x2a0] sm:$0xff]
    %v863 = vld [vmem:[#allocation8 + $0x2a8] sm:$0xff]
    %v864 = vld [vmem:[#allocation8 + $0x2b0] sm:$0xff]
    %v865 = vld [vmem:[#allocation8 + $0x2b8] sm:$0xff]
    %v866 = vld [vmem:[#allocation8 + $0x2c0] sm:$0xff]
    %v867 = vld [vmem:[#allocation8 + $0x2c8] sm:$0xff]
    %v868 = vld [vmem:[#allocation8 + $0x2d0] sm:$0xff]
    %v869 = vld [vmem:[#allocation8 + $0x2d8] sm:$0xff]
    %v870 = vld [vmem:[#allocation8 + $0x2e0] sm:$0xff]
    %v871 = vld [vmem:[#allocation8 + $0x2e8] sm:$0xff]
    %v872 = vld [vmem:[#allocation8 + $0x2f0] sm:$0xff]
    %v873 = vld [vmem:[#allocation8 + $0x2f8] sm:$0xff]
    %v874 = vld [vmem:[#allocation8 + $0x300] sm:$0xff]
    %v875 = vld [vmem:[#allocation8 + $0x308] sm:$0xff]
    %v876 = vld [vmem:[#allocation8 + $0x310] sm:$0xff]
    %v877 = vld [vmem:[#allocation8 + $0x318] sm:$0xff]
    %v878 = vld [vmem:[#allocation8 + $0x320] sm:$0xff]
    %v879 = vld [vmem:[#allocation8 + $0x328] sm:$0xff]
    %v880 = vld [vmem:[#allocation8 + $0x330] sm:$0xff]
    %v881 = vld [vmem:[#allocation8 + $0x338] sm:$0xff]
    %v882 = vld [vmem:[#allocation8 + $0x340] sm:$0xff]
    %v883 = vld [vmem:[#allocation8 + $0x348] sm:$0xff]
    %v884 = vld [vmem:[#allocation8 + $0x350] sm:$0xff]
    %v885 = vld [vmem:[#allocation8 + $0x358] sm:$0xff]
    %v886 = vld [vmem:[#allocation8 + $0x360] sm:$0xff]
    %v887 = vld [vmem:[#allocation8 + $0x368] sm:$0xff]
    %v888 = vld [vmem:[#allocation8 + $0x370] sm:$0xff]
    %v889 = vld [vmem:[#allocation8 + $0x378] sm:$0xff]
    %v890 = vld [vmem:[#allocation8 + $0x380] sm:$0xff]
    %v891 = vld [vmem:[#allocation8 + $0x388] sm:$0xff]
    %v892 = vld [vmem:[#allocation8 + $0x390] sm:$0xff]
    %v893 = vld [vmem:[#allocation8 + $0x398] sm:$0xff]
    %v894 = vld [vmem:[#allocation8 + $0x3a0] sm:$0xff]
    %v895 = vld [vmem:[#allocation8 + $0x3a8] sm:$0xff]
    %v896 = vld [vmem:[#allocation8 + $0x3b0] sm:$0xff]
    %v897 = vld [vmem:[#allocation8 + $0x3b8] sm:$0xff]
    %v898 = vld [vmem:[#allocation8 + $0x3c0] sm:$0xff]
    %v899 = vld [vmem:[#allocation8 + $0x3c8] sm:$0xff]
    %v900 = vld [vmem:[#allocation8 + $0x3d0] sm:$0xff]
    %v901 = vld [vmem:[#allocation8 + $0x3d8] sm:$0xff]
    %v902 = vld [vmem:[#allocation8 + $0x3e0] sm:$0xff]
    %v903 = vld [vmem:[#allocation8 + $0x3e8] sm:$0xff]
    %v904 = vld [vmem:[#allocation8 + $0x3f0] sm:$0xff]
    %v905 = vld [vmem:[#allocation8 + $0x3f8] sm:$0xff]
    %v906 = vld [vmem:[#allocation8 + $0x400] sm:$0xff]
    %v907 = vld [vmem:[#allocation8 + $0x408] sm:$0xff]
    %v908 = vld [vmem:[#allocation8 + $0x410] sm:$0xff]
    %v909 = vld [vmem:[#allocation8 + $0x418] sm:$0xff]
    %v910 = vld [vmem:[#allocation8 + $0x420] sm:$0xff]
    %v911 = vld [vmem:[#allocation8 + $0x428] sm:$0xff]
    %v912 = vld [vmem:[#allocation8 + $0x430] sm:$0xff]
    %v913 = vld [vmem:[#allocation8 + $0x438] sm:$0xff]
    %v914 = vld [vmem:[#allocation8 + $0x440] sm:$0xff]
    %v915 = vld [vmem:[#allocation8 + $0x448] sm:$0xff]
    %v916 = vld [vmem:[#allocation8 + $0x450] sm:$0xff]
    %v917 = vld [vmem:[#allocation8 + $0x458] sm:$0xff]
    %v918 = vld [vmem:[#allocation8 + $0x460] sm:$0xff]
    %v919 = vld [vmem:[#allocation8 + $0x468] sm:$0xff]
    %v920 = vld [vmem:[#allocation8 + $0x470] sm:$0xff]
    %v921 = vld [vmem:[#allocation8 + $0x478] sm:$0xff]
    %v922 = vld [vmem:[#allocation8 + $0x480] sm:$0xff]
    %v923 = vld [vmem:[#allocation8 + $0x488] sm:$0xff]
    %v924 = vld [vmem:[#allocation8 + $0x490] sm:$0xff]
    %v925 = vld [vmem:[#allocation8 + $0x498] sm:$0xff]
    %v926 = vld [vmem:[#allocation8 + $0x4a0] sm:$0xff]
    %v927 = vld [vmem:[#allocation8 + $0x4a8] sm:$0xff]
    %v928 = vld [vmem:[#allocation8 + $0x4b0] sm:$0xff]
    %v929 = vld [vmem:[#allocation8 + $0x4b8] sm:$0xff]
    %v930 = vld [vmem:[#allocation8 + $0x4c0] sm:$0xff]
    %v931 = vld [vmem:[#allocation8 + $0x4c8] sm:$0xff]
    %v932 = vld [vmem:[#allocation8 + $0x4d0] sm:$0xff]
    %v933 = vld [vmem:[#allocation8 + $0x4d8] sm:$0xff]
    %v934 = vld [vmem:[#allocation8 + $0x4e0] sm:$0xff]
    %v935 = vld [vmem:[#allocation8 + $0x4e8] sm:$0xff]
    %v936 = vld [vmem:[#allocation8 + $0x4f0] sm:$0xff]
    %v937 = vld [vmem:[#allocation8 + $0x4f8] sm:$0xff]
    %v938 = vld [vmem:[#allocation8 + $0x500] sm:$0xff]
    %v939 = vld [vmem:[#allocation8 + $0x508] sm:$0xff]
    %v940 = vld [vmem:[#allocation8 + $0x510] sm:$0xff]
    %v941 = vld [vmem:[#allocation8 + $0x518] sm:$0xff]
    %v942 = vld [vmem:[#allocation8 + $0x520] sm:$0xff]
    %v943 = vld [vmem:[#allocation8 + $0x528] sm:$0xff]
    %v944 = vld [vmem:[#allocation8 + $0x530] sm:$0xff]
    %v945 = vld [vmem:[#allocation8 + $0x538] sm:$0xff]
    %v946 = vld [vmem:[#allocation8 + $0x540] sm:$0xff]
    %v947 = vld [vmem:[#allocation8 + $0x548] sm:$0xff]
    %v948 = vld [vmem:[#allocation8 + $0x550] sm:$0xff]
    %v949 = vld [vmem:[#allocation8 + $0x558] sm:$0xff]
    %v950 = vld [vmem:[#allocation8 + $0x560] sm:$0xff]
    %v951 = vld [vmem:[#allocation8 + $0x568] sm:$0xff]
    %v952 = vld [vmem:[#allocation8 + $0x570] sm:$0xff]
    %v953 = vld [vmem:[#allocation8 + $0x578] sm:$0xff]
    %v954 = vld [vmem:[#allocation8 + $0x580] sm:$0xff]
    %v955 = vld [vmem:[#allocation8 + $0x588] sm:$0xff]
    %v956 = vld [vmem:[#allocation8 + $0x590] sm:$0xff]
    %v957 = vld [vmem:[#allocation8 + $0x598] sm:$0xff]
    %v958 = vld [vmem:[#allocation8 + $0x5a0] sm:$0xff]
    %v959 = vld [vmem:[#allocation8 + $0x5a8] sm:$0xff]
    %v960 = vld [vmem:[#allocation8 + $0x5b0] sm:$0xff]
    %v961 = vld [vmem:[#allocation8 + $0x5b8] sm:$0xff]
    %v962 = vld [vmem:[#allocation8 + $0x5c0] sm:$0xff]
    %v963 = vld [vmem:[#allocation8 + $0x5c8] sm:$0xff]
    %v964 = vld [vmem:[#allocation8 + $0x5d0] sm:$0xff]
    %v965 = vld [vmem:[#allocation8 + $0x5d8] sm:$0xff]
    %v966 = vld [vmem:[#allocation8 + $0x5e0] sm:$0xff]
    %v967 = vld [vmem:[#allocation8 + $0x5e8] sm:$0xff]
    %v968 = vld [vmem:[#allocation8 + $0x5f0] sm:$0xff]
    %v969 = vld [vmem:[#allocation8 + $0x5f8] sm:$0xff]
    %v970 = vld [vmem:[#allocation8 + $0x600] sm:$0xff]
    %v971 = vld [vmem:[#allocation8 + $0x608] sm:$0xff]
    %v972 = vld [vmem:[#allocation8 + $0x610] sm:$0xff]
    %v973 = vld [vmem:[#allocation8 + $0x618] sm:$0xff]
    %v974 = vld [vmem:[#allocation8 + $0x620] sm:$0xff]
    %v975 = vld [vmem:[#allocation8 + $0x628] sm:$0xff]
    %v976 = vld [vmem:[#allocation8 + $0x630] sm:$0xff]
    %v977 = vld [vmem:[#allocation8 + $0x638] sm:$0xff]
    %v978 = vld [vmem:[#allocation8 + $0x640] sm:$0xff]
    %v979 = vld [vmem:[#allocation8 + $0x648] sm:$0xff]
    %v980 = vld [vmem:[#allocation8 + $0x650] sm:$0xff]
    %v981 = vld [vmem:[#allocation8 + $0x658] sm:$0xff]
    %v982 = vld [vmem:[#allocation8 + $0x660] sm:$0xff]
    %v983 = vld [vmem:[#allocation8 + $0x668] sm:$0xff]
    %v984 = vld [vmem:[#allocation8 + $0x670] sm:$0xff]
    %v985 = vld [vmem:[#allocation8 + $0x678] sm:$0xff]
    %v986 = vld [vmem:[#allocation8 + $0x680] sm:$0xff]
    %v987 = vld [vmem:[#allocation8 + $0x688] sm:$0xff]
    %v988 = vld [vmem:[#allocation8 + $0x690] sm:$0xff]
    %v989 = vld [vmem:[#allocation8 + $0x698] sm:$0xff]
    %v990 = vld [vmem:[#allocation8 + $0x6a0] sm:$0xff]
    %v991 = vld [vmem:[#allocation8 + $0x6a8] sm:$0xff]
    %v992 = vld [vmem:[#allocation8 + $0x6b0] sm:$0xff]
    %v993 = vld [vmem:[#allocation8 + $0x6b8] sm:$0xff]
    %v994 = vld [vmem:[#allocation8 + $0x6c0] sm:$0xff]
    %v995 = vld [vmem:[#allocation8 + $0x6c8] sm:$0xff]
    %v996 = vld [vmem:[#allocation8 + $0x6d0] sm:$0xff]
    %v997 = vld [vmem:[#allocation8 + $0x6d8] sm:$0xff]
    %v998 = vld [vmem:[#allocation8 + $0x6e0] sm:$0xff]
    %v999 = vld [vmem:[#allocation8 + $0x6e8] sm:$0xff]
    %v1000 = vld [vmem:[#allocation8 + $0x6f0] sm:$0xff]
    %v1001 = vld [vmem:[#allocation8 + $0x6f8] sm:$0xff]
    %v1002 = vld [vmem:[#allocation8 + $0x700] sm:$0xff]
    %v1003 = vld [vmem:[#allocation8 + $0x708] sm:$0xff]
    %v1004 = vld [vmem:[#allocation8 + $0x710] sm:$0xff]
    %v1005 = vld [vmem:[#allocation8 + $0x718] sm:$0xff]
    %v1006 = vld [vmem:[#allocation8 + $0x720] sm:$0xff]
    %v1007 = vld [vmem:[#allocation8 + $0x728] sm:$0xff]
    %v1008 = vld [vmem:[#allocation8 + $0x730] sm:$0xff]
    %v1009 = vld [vmem:[#allocation8 + $0x738] sm:$0xff]
    %v1010 = vld [vmem:[#allocation8 + $0x740] sm:$0xff]
    %v1011 = vld [vmem:[#allocation8 + $0x748] sm:$0xff]
    %v1012 = vld [vmem:[#allocation8 + $0x750] sm:$0xff]
    %v1013 = vld [vmem:[#allocation8 + $0x758] sm:$0xff]
    %v1014 = vld [vmem:[#allocation8 + $0x760] sm:$0xff]
    %v1015 = vld [vmem:[#allocation8 + $0x768] sm:$0xff]
    %v1016 = vld [vmem:[#allocation8 + $0x770] sm:$0xff]
    %v1017 = vld [vmem:[#allocation8 + $0x778] sm:$0xff]
    %v1018 = vld [vmem:[#allocation8 + $0x780] sm:$0xff]
    %v1019 = vld [vmem:[#allocation8 + $0x788] sm:$0xff]
    %v1020 = vld [vmem:[#allocation8 + $0x790] sm:$0xff]
    %v1021 = vld [vmem:[#allocation8 + $0x798] sm:$0xff]
    %v1022 = vld [vmem:[#allocation8 + $0x7a0] sm:$0xff]
    %v1023 = vld [vmem:[#allocation8 + $0x7a8] sm:$0xff]
    %v1024 = vld [vmem:[#allocation8 + $0x7b0] sm:$0xff]
    %v1025 = vld [vmem:[#allocation8 + $0x7b8] sm:$0xff]
    %v1026 = vld [vmem:[#allocation8 + $0x7c0] sm:$0xff]
    %v1027 = vld [vmem:[#allocation8 + $0x7c8] sm:$0xff]
    %v1028 = vld [vmem:[#allocation8 + $0x7d0] sm:$0xff]
    %v1029 = vld [vmem:[#allocation8 + $0x7d8] sm:$0xff]
    %v1030 = vld [vmem:[#allocation8 + $0x7e0] sm:$0xff]
    %v1031 = vld [vmem:[#allocation8 + $0x7e8] sm:$0xff]
    %v1032 = vld [vmem:[#allocation8 + $0x7f0] sm:$0xff]
    %v1033 = vld [vmem:[#allocation8 + $0x7f8] sm:$0xff]
    %1034 = vmatprep.subr.mxu0 %v779
    %1035 = vmatpush1.msra.mxu0 %v778
    %1036 = vmatprep.subr.mxu0 %v781
    %1037 = vmatpush1.msra.mxu0 %v780
    %1038 = vmatprep.subr.mxu0 %v783
    %1039 = vmatpush1.msra.mxu0 %v782
    %1040 = vmatprep.subr.mxu0 %v785
    %1041 = vmatpush1.msra.mxu0 %v784
    %1042 = vmatprep.subr.mxu0 %v787
    %1043 = vmatpush1.msra.mxu0 %v786
    %1044 = vmatprep.subr.mxu0 %v789
    %1045 = vmatpush1.msra.mxu0 %v788
    %1046 = vmatprep.subr.mxu0 %v791
    %1047 = vmatpush1.msra.mxu0 %v790
    %1048 = vmatprep.subr.mxu0 %v793
    %1049 = vmatpush1.msra.mxu0 %v792
    %1050 = vmatprep.subr.mxu0 %v795
    %1051 = vmatpush1.msra.mxu0 %v794
    %1052 = vmatprep.subr.mxu0 %v797
    %1053 = vmatpush1.msra.mxu0 %v796
    %1054 = vmatprep.subr.mxu0 %v799
    %1055 = vmatpush1.msra.mxu0 %v798
    %1056 = vmatprep.subr.mxu0 %v801
    %1057 = vmatpush1.msra.mxu0 %v800
    %1058 = vmatprep.subr.mxu0 %v803
    %1059 = vmatpush1.msra.mxu0 %v802
    %1060 = vmatprep.subr.mxu0 %v805
    %1061 = vmatpush1.msra.mxu0 %v804
    %1062 = vmatprep.subr.mxu0 %v807
    %1063 = vmatpush1.msra.mxu0 %v806
    %1064 = vmatprep.subr.mxu0 %v809
    %1065 = vmatpush1.msra.mxu0 %v808
    %1066 = vmatprep.subr.mxu0 %v811
    %1067 = vmatpush1.msra.mxu0 %v810
    %1068 = vmatprep.subr.mxu0 %v813
    %1069 = vmatpush1.msra.mxu0 %v812
    %1070 = vmatprep.subr.mxu0 %v815
    %1071 = vmatpush1.msra.mxu0 %v814
    %1072 = vmatprep.subr.mxu0 %v817
    %1073 = vmatpush1.msra.mxu0 %v816
    %1074 = vmatprep.subr.mxu0 %v819
    %1075 = vmatpush1.msra.mxu0 %v818
    %1076 = vmatprep.subr.mxu0 %v821
    %1077 = vmatpush1.msra.mxu0 %v820
    %1078 = vmatprep.subr.mxu0 %v823
    %1079 = vmatpush1.msra.mxu0 %v822
    %1080 = vmatprep.subr.mxu0 %v825
    %1081 = vmatpush1.msra.mxu0 %v824
    %1082 = vmatprep.subr.mxu0 %v827
    %1083 = vmatpush1.msra.mxu0 %v826
    %1084 = vmatprep.subr.mxu0 %v829
    %1085 = vmatpush1.msra.mxu0 %v828
    %1086 = vmatprep.subr.mxu0 %v831
    %1087 = vmatpush1.msra.mxu0 %v830
    %1088 = vmatprep.subr.mxu0 %v833
    %1089 = vmatpush1.msra.mxu0 %v832
    %1090 = vmatprep.subr.mxu0 %v835
    %1091 = vmatpush1.msra.mxu0 %v834
    %1092 = vmatprep.subr.mxu0 %v837
    %1093 = vmatpush1.msra.mxu0 %v836
    %1094 = vmatprep.subr.mxu0 %v839
    %1095 = vmatpush1.msra.mxu0 %v838
    %1096 = vmatprep.subr.mxu0 %v841
    %1097 = vmatpush1.msra.mxu0 %v840
    %1098 = vmatprep.mubr.f32.mxu0 %v759
    %1099 = vmatmul.mubr.f32.gmra.mrb[0].mxu0 %v758
    %v1100 = vpop.f32.mrb[0].mxu0
    %v1101 = vadd.f32 0.0, %v1100
    %v1102 = vpop.f32.mrb[0].mxu0
    %v1103 = vadd.f32 0.0, %v1102
    %1104 = vmatprep.mubr.f32.mxu0 %v767
    %1105 = vmatmul.mubr.f32.gmra.mrb[0].mxu0 %v766
    %v1106 = vpop.f32.mrb[0].mxu0
    %v1107 = vadd.f32 0.0, %v1106
    %v1108 = vpop.f32.mrb[0].mxu0
    %v1109 = vadd.f32 0.0, %v1108
    %1110 = vdwg.mxu0
    %1111 = vmatprep.subr.mxu0 %v843
    %1112 = vmatpush1.msra.mxu0 %v842
    %1113 = vmatprep.subr.mxu0 %v845
    %1114 = vmatpush1.msra.mxu0 %v844
    %1115 = vmatprep.subr.mxu0 %v847
    %1116 = vmatpush1.msra.mxu0 %v846
    %1117 = vmatprep.subr.mxu0 %v849
    %1118 = vmatpush1.msra.mxu0 %v848
    %1119 = vmatprep.subr.mxu0 %v851
    %1120 = vmatpush1.msra.mxu0 %v850
    %1121 = vmatprep.subr.mxu0 %v853
    %1122 = vmatpush1.msra.mxu0 %v852
    %1123 = vmatprep.subr.mxu0 %v855
    %1124 = vmatpush1.msra.mxu0 %v854
    %1125 = vmatprep.subr.mxu0 %v857
    %1126 = vmatpush1.msra.mxu0 %v856
    %1127 = vmatprep.subr.mxu0 %v859
    %1128 = vmatpush1.msra.mxu0 %v858
    %1129 = vmatprep.subr.mxu0 %v861
    %1130 = vmatpush1.msra.mxu0 %v860
    %1131 = vmatprep.subr.mxu0 %v863
    %1132 = vmatpush1.msra.mxu0 %v862
    %1133 = vmatprep.subr.mxu0 %v865
    %1134 = vmatpush1.msra.mxu0 %v864
    %1135 = vmatprep.subr.mxu0 %v867
    %1136 = vmatpush1.msra.mxu0 %v866
    %1137 = vmatprep.subr.mxu0 %v869
    %1138 = vmatpush1.msra.mxu0 %v868
    %1139 = vmatprep.subr.mxu0 %v871
    %1140 = vmatpush1.msra.mxu0 %v870
    %1141 = vmatprep.subr.mxu0 %v873
    %1142 = vmatpush1.msra.mxu0 %v872
    %1143 = vmatprep.subr.mxu0 %v875
    %1144 = vmatpush1.msra.mxu0 %v874
    %1145 = vmatprep.subr.mxu0 %v877
    %1146 = vmatpush1.msra.mxu0 %v876
    %1147 = vmatprep.subr.mxu0 %v879
    %1148 = vmatpush1.msra.mxu0 %v878
    %1149 = vmatprep.subr.mxu0 %v881
    %1150 = vmatpush1.msra.mxu0 %v880
    %1151 = vmatprep.subr.mxu0 %v883
    %1152 = vmatpush1.msra.mxu0 %v882
    %1153 = vmatprep.subr.mxu0 %v885
    %1154 = vmatpush1.msra.mxu0 %v884
    %1155 = vmatprep.subr.mxu0 %v887
    %1156 = vmatpush1.msra.mxu0 %v886
    %1157 = vmatprep.subr.mxu0 %v889
    %1158 = vmatpush1.msra.mxu0 %v888
    %1159 = vmatprep.subr.mxu0 %v891
    %1160 = vmatpush1.msra.mxu0 %v890
    %1161 = vmatprep.subr.mxu0 %v893
    %1162 = vmatpush1.msra.mxu0 %v892
    %1163 = vmatprep.subr.mxu0 %v895
    %1164 = vmatpush1.msra.mxu0 %v894
    %1165 = vmatprep.subr.mxu0 %v897
    %1166 = vmatpush1.msra.mxu0 %v896
    %1167 = vmatprep.subr.mxu0 %v899
    %1168 = vmatpush1.msra.mxu0 %v898
    %1169 = vmatprep.subr.mxu0 %v901
    %1170 = vmatpush1.msra.mxu0 %v900
    %1171 = vmatprep.subr.mxu0 %v903
    %1172 = vmatpush1.msra.mxu0 %v902
    %1173 = vmatprep.subr.mxu0 %v905
    %1174 = vmatpush1.msra.mxu0 %v904
    %1175 = vmatprep.mubr.f32.mxu0 %v761
    %1176 = vmatmul.mubr.f32.gmra.mrb[0].mxu0 %v760
    %v1177 = vpop.f32.mrb[0].mxu0
    %v1178 = vadd.f32 %v1101, %v1177
    %v1179 = vpop.f32.mrb[0].mxu0
    %v1180 = vadd.f32 %v1103, %v1179
    %1181 = vmatprep.mubr.f32.mxu0 %v769
    %1182 = vmatmul.mubr.f32.gmra.mrb[0].mxu0 %v768
    %v1183 = vpop.f32.mrb[0].mxu0
    %v1184 = vadd.f32 %v1107, %v1183
    %v1185 = vpop.f32.mrb[0].mxu0
    %v1186 = vadd.f32 %v1109, %v1185
    %1187 = vdwg.mxu0
    %1188 = vmatprep.subr.mxu0 %v907
    %1189 = vmatpush1.msra.mxu0 %v906
    %1190 = vmatprep.subr.mxu0 %v909
    %1191 = vmatpush1.msra.mxu0 %v908
    %1192 = vmatprep.subr.mxu0 %v911
    %1193 = vmatpush1.msra.mxu0 %v910
    %1194 = vmatprep.subr.mxu0 %v913
    %1195 = vmatpush1.msra.mxu0 %v912
    %1196 = vmatprep.subr.mxu0 %v915
    %1197 = vmatpush1.msra.mxu0 %v914
    %1198 = vmatprep.subr.mxu0 %v917
    %1199 = vmatpush1.msra.mxu0 %v916
    %1200 = vmatprep.subr.mxu0 %v919
    %1201 = vmatpush1.msra.mxu0 %v918
    %1202 = vmatprep.subr.mxu0 %v921
    %1203 = vmatpush1.msra.mxu0 %v920
    %1204 = vmatprep.subr.mxu0 %v923
    %1205 = vmatpush1.msra.mxu0 %v922
    %1206 = vmatprep.subr.mxu0 %v925
    %1207 = vmatpush1.msra.mxu0 %v924
    %1208 = vmatprep.subr.mxu0 %v927
    %1209 = vmatpush1.msra.mxu0 %v926
    %1210 = vmatprep.subr.mxu0 %v929
    %1211 = vmatpush1.msra.mxu0 %v928
    %1212 = vmatprep.subr.mxu0 %v931
    %1213 = vmatpush1.msra.mxu0 %v930
    %1214 = vmatprep.subr.mxu0 %v933
    %1215 = vmatpush1.msra.mxu0 %v932
    %1216 = vmatprep.subr.mxu0 %v935
    %1217 = vmatpush1.msra.mxu0 %v934
    %1218 = vmatprep.subr.mxu0 %v937
    %1219 = vmatpush1.msra.mxu0 %v936
    %1220 = vmatprep.subr.mxu0 %v939
    %1221 = vmatpush1.msra.mxu0 %v938
    %1222 = vmatprep.subr.mxu0 %v941
    %1223 = vmatpush1.msra.mxu0 %v940
    %1224 = vmatprep.subr.mxu0 %v943
    %1225 = vmatpush1.msra.mxu0 %v942
    %1226 = vmatprep.subr.mxu0 %v945
    %1227 = vmatpush1.msra.mxu0 %v944
    %1228 = vmatprep.subr.mxu0 %v947
    %1229 = vmatpush1.msra.mxu0 %v946
    %1230 = vmatprep.subr.mxu0 %v949
    %1231 = vmatpush1.msra.mxu0 %v948
    %1232 = vmatprep.subr.mxu0 %v951
    %1233 = vmatpush1.msra.mxu0 %v950
    %1234 = vmatprep.subr.mxu0 %v953
    %1235 = vmatpush1.msra.mxu0 %v952
    %1236 = vmatprep.subr.mxu0 %v955
    %1237 = vmatpush1.msra.mxu0 %v954
    %1238 = vmatprep.subr.mxu0 %v957
    %1239 = vmatpush1.msra.mxu0 %v956
    %1240 = vmatprep.subr.mxu0 %v959
    %1241 = vmatpush1.msra.mxu0 %v958
    %1242 = vmatprep.subr.mxu0 %v961
    %1243 = vmatpush1.msra.mxu0 %v960
    %1244 = vmatprep.subr.mxu0 %v963
    %1245 = vmatpush1.msra.mxu0 %v962
    %1246 = vmatprep.subr.mxu0 %v965
    %1247 = vmatpush1.msra.mxu0 %v964
    %1248 = vmatprep.subr.mxu0 %v967
    %1249 = vmatpush1.msra.mxu0 %v966
    %1250 = vmatprep.subr.mxu0 %v969
    %1251 = vmatpush1.msra.mxu0 %v968
    %1252 = vmatprep.mubr.f32.mxu0 %v763
    %1253 = vmatmul.mubr.f32.gmra.mrb[0].mxu0 %v762
    %v1254 = vpop.f32.mrb[0].mxu0
    %v1255 = vadd.f32 %v1178, %v1254
    %v1256 = vpop.f32.mrb[0].mxu0
    %v1257 = vadd.f32 %v1180, %v1256
    %1258 = vmatprep.mubr.f32.mxu0 %v771
    %1259 = vmatmul.mubr.f32.gmra.mrb[0].mxu0 %v770
    %v1260 = vpop.f32.mrb[0].mxu0
    %v1261 = vadd.f32 %v1184, %v1260
    %v1262 = vpop.f32.mrb[0].mxu0
    %v1263 = vadd.f32 %v1186, %v1262
    %1264 = vdwg.mxu0
    %1265 = vmatprep.subr.mxu0 %v971
    %1266 = vmatpush1.msra.mxu0 %v970
    %1267 = vmatprep.subr.mxu0 %v973
    %1268 = vmatpush1.msra.mxu0 %v972
    %1269 = vmatprep.subr.mxu0 %v975
    %1270 = vmatpush1.msra.mxu0 %v974
    %1271 = vmatprep.subr.mxu0 %v977
    %1272 = vmatpush1.msra.mxu0 %v976
    %1273 = vmatprep.subr.mxu0 %v979
    %1274 = vmatpush1.msra.mxu0 %v978
    %1275 = vmatprep.subr.mxu0 %v981
    %1276 = vmatpush1.msra.mxu0 %v980
    %1277 = vmatprep.subr.mxu0 %v983
    %1278 = vmatpush1.msra.mxu0 %v982
    %1279 = vmatprep.subr.mxu0 %v985
    %1280 = vmatpush1.msra.mxu0 %v984
    %1281 = vmatprep.subr.mxu0 %v987
    %1282 = vmatpush1.msra.mxu0 %v986
    %1283 = vmatprep.subr.mxu0 %v989
    %1284 = vmatpush1.msra.mxu0 %v988
    %1285 = vmatprep.subr.mxu0 %v991
    %1286 = vmatpush1.msra.mxu0 %v990
    %1287 = vmatprep.subr.mxu0 %v993
    %1288 = vmatpush1.msra.mxu0 %v992
    %1289 = vmatprep.subr.mxu0 %v995
    %1290 = vmatpush1.msra.mxu0 %v994
    %1291 = vmatprep.subr.mxu0 %v997
    %1292 = vmatpush1.msra.mxu0 %v996
    %1293 = vmatprep.subr.mxu0 %v999
    %1294 = vmatpush1.msra.mxu0 %v998
    %1295 = vmatprep.subr.mxu0 %v1001
    %1296 = vmatpush1.msra.mxu0 %v1000
    %1297 = vmatprep.subr.mxu0 %v1003
    %1298 = vmatpush1.msra.mxu0 %v1002
    %1299 = vmatprep.subr.mxu0 %v1005
    %1300 = vmatpush1.msra.mxu0 %v1004
    %1301 = vmatprep.subr.mxu0 %v1007
    %1302 = vmatpush1.msra.mxu0 %v1006
    %1303 = vmatprep.subr.mxu0 %v1009
    %1304 = vmatpush1.msra.mxu0 %v1008
    %1305 = vmatprep.subr.mxu0 %v1011
    %1306 = vmatpush1.msra.mxu0 %v1010
    %1307 = vmatprep.subr.mxu0 %v1013
    %1308 = vmatpush1.msra.mxu0 %v1012
    %1309 = vmatprep.subr.mxu0 %v1015
    %1310 = vmatpush1.msra.mxu0 %v1014
    %1311 = vmatprep.subr.mxu0 %v1017
    %1312 = vmatpush1.msra.mxu0 %v1016
    %1313 = vmatprep.subr.mxu0 %v1019
    %1314 = vmatpush1.msra.mxu0 %v1018
    %1315 = vmatprep.subr.mxu0 %v1021
    %1316 = vmatpush1.msra.mxu0 %v1020
    %1317 = vmatprep.subr.mxu0 %v1023
    %1318 = vmatpush1.msra.mxu0 %v1022
    %1319 = vmatprep.subr.mxu0 %v1025
    %1320 = vmatpush1.msra.mxu0 %v1024
    %1321 = vmatprep.subr.mxu0 %v1027
    %1322 = vmatpush1.msra.mxu0 %v1026
    %1323 = vmatprep.subr.mxu0 %v1029
    %1324 = vmatpush1.msra.mxu0 %v1028
    %1325 = vmatprep.subr.mxu0 %v1031
    %1326 = vmatpush1.msra.mxu0 %v1030
    %1327 = vmatprep.subr.mxu0 %v1033
    %1328 = vmatpush1.msra.mxu0 %v1032
    %1329 = vmatprep.mubr.f32.mxu0 %v765
    %1330 = vmatmul.mubr.f32.gmra.mrb[0].mxu0 %v764
    %v1331 = vpop.f32.mrb[0].mxu0
    %v1332 = vadd.f32 %v1255, %v1331
    %v1333 = vpop.f32.mrb[0].mxu0
    %v1334 = vadd.f32 %v1257, %v1333
    %1335 = vmatprep.mubr.f32.mxu0 %v773
    %1336 = vmatmul.mubr.f32.gmra.mrb[0].mxu0 %v772
    %v1337 = vpop.f32.mrb[0].mxu0
    %v1338 = vadd.f32 %v1261, %v1337
    %v1339 = vpop.f32.mrb[0].mxu0
    %v1340 = vadd.f32 %v1263, %v1339
    %1341 = vdwg.mxu0
    %v1342 = vadd.f32 %v774, %v1332
    %v1343 = vadd.f32 %v775, %v1334
    %v1344 = vadd.f32 %v776, %v1338
    %v1345 = vadd.f32 %v777, %v1340
    %1346 = vst [vmem:[#allocation10] sm:$0xff] %v1342
    %1347 = vst [vmem:[#allocation10 + $0x8] sm:$0xff] %v1343
    %1348 = vst [vmem:[#allocation10 + $0x10] sm:$0xff] %v1344
    %1349 = vst [vmem:[#allocation10 + $0x18] sm:$0xff] %v1345
    // Predicated region
    $region42: #{tpu_custom_call.1} parent=1 // pred_check
      %p1350 = pneg %p74
    $region43: #{tpu_custom_call.1} parent=1 // pred_check_branch
      %1352 = sbr.rel (%p1350) target = $region45
    $region44: #{tpu_custom_call.1} parent=1 // pred_region
      %v1353 = vld [vmem:[#allocation10] sm:$0xff]
      %v1354 = vld [vmem:[#allocation10 + $0x8] sm:$0xff]
      %v1355 = vld [vmem:[#allocation10 + $0x10] sm:$0xff]
      %v1356 = vld [vmem:[#allocation10 + $0x18] sm:$0xff]
      %v1357 = vld [vmem:[%s4] sm:$0x3]
      %v1359 = vlaneseq
      %v1360 = vshrl.u32 %v1359, 7
      %v1361 = vsub.s32 0, %v1360
      %v1362 = vrot.slane %v1357, %v1361
      %v1363 = vlaneseq
      %v1364 = vshrl.u32 %v1363, 7
      %v1365 = vsub.s32 1, %v1364
      %v1366 = vrot.slane %v1357, %v1365
      %v1369 = vadd.f32 %v1353, %v1362
      %v1370 = vadd.f32 %v1354, %v1366
      %v1371 = vadd.f32 %v1355, %v1362
      %v1372 = vadd.f32 %v1356, %v1366
      %1373 = vst [vmem:[#allocation10] sm:$0xff] %v1369
      %1374 = vst [vmem:[#allocation10 + $0x8] sm:$0xff] %v1370
      %1375 = vst [vmem:[#allocation10 + $0x10] sm:$0xff] %v1371
      %1376 = vst [vmem:[#allocation10 + $0x18] sm:$0xff] %v1372
    $region45: #{tpu_custom_call.1} parent=1 // pred_fallthru
      _
    // Predicated region
    $region46: #{tpu_custom_call.1} parent=1 // pred_check
      _
    $region47: #{tpu_custom_call.1} parent=1 // pred_check_branch
      %1378 = sbr.rel (0) target = $region49
    $region48: #{tpu_custom_call.1} parent=1 // pred_region
      %s1380 = ssub.s32 512, 512
      %1381 = vsyncadd [#allocation4], %s1380
      %s1382 = sshll.u32 [#allocation10], 4
      %s1383 = int_to_ptr.vmem [resolvable:$true] %s1382
      %1388 = dma.vmem_to_hbm [thread:$0]  %s1383, 512, %s5, [#allocation4], 256, 256, 16
    $region49: #{tpu_custom_call.1} parent=1 // pred_fallthru
      _
    // Predicated region
    $region50: #{tpu_custom_call.1} parent=1 // pred_check
      _
    $region51: #{tpu_custom_call.1} parent=1 // pred_check_branch
      %1390 = sbr.rel (0) target = $region53
    $region52: #{tpu_custom_call.1} parent=1 // pred_region
      %1391 = dma.done [#allocation4], 512
    $region53: #{tpu_custom_call.1} parent=1 // pred_fallthru
      _
    %1392 = vsyncpa [#allocation3], 1
    %1393 = vsyncpa [#allocation6], 1
    %1394 = vsyncpa [#allocation9], 1
    %1395 = vsyncpa [#allocation4], 1

</llo_original>
